<compile_context>
chip_gen: v7x
topology: tpu7x:2x2x1
jax: 0.10.0
libtpu: 0.0.40
codegen_flags: <defaults>
</compile_context>

<pallas_src>
import functools
import math

import numpy as np

import jax
import jax.numpy as jnp
from jax.experimental import pallas as pl
from jax.experimental.pallas import tpu as pltpu


# MXU operand dtype: bf16 operands + f32 accumulation.  Elementwise math stays
# f32 (required on v5e, keeps accuracy); parity with the f32 PyTorch reference
# is within bf16-mantissa tolerance.
COMPUTE_DTYPE = jnp.bfloat16


def _pad8(n):
    return ((int(n) + 7) // 8) * 8


# ---------------------------------------------------------------------------
# In-kernel helpers
# ---------------------------------------------------------------------------
def _mm(a, b):
    return jnp.dot(a.astype(COMPUTE_DTYPE), b.astype(COMPUTE_DTYPE),
                   preferred_element_type=jnp.float32)


def _elu(y):
    # ELU(alpha=1).  Negative branch: exp(t)-1 with a 2nd-order Taylor patch
    # near 0 (expm1-accurate) -- uses only ops with guaranteed Mosaic lowering.
    t = jnp.minimum(y, 0.0)
    em1 = jnp.exp(t) - 1.0
    em1 = jnp.where(t > -1e-3, t + 0.5 * t * t, em1)
    return jnp.where(y > 0.0, y, em1)


# ---------------------------------------------------------------------------
# The single fused forward kernel
# ---------------------------------------------------------------------------
def _forward_kernel(params_ref, comps_ref, loops_ref, out_ref,
                    results_ref, nh_ref, ch_ref, cemb_ref,
                    *, layout, sched, meta, B_pad):
    E = meta["E"]
    H = E

    def ld(name):
        # Lazy, per-use read of one parameter from the packed VMEM slab.
        off, r, c = layout[name]
        return params_ref[pl.ds(off, r), pl.ds(0, c)]

    def mlp(x, prefix, n_layers):
        for i in range(n_layers):
            x = _elu(_mm(x, ld(f"{prefix}_w_{i}")) + ld(f"{prefix}_b_{i}"))
        return x

    def lstm_last_h(xs, prefix):
        # Single-layer LSTM, PyTorch gate order (i,f,g,o), zero initial state.
        # Fused gates: wih [in,4H], whh [H,4H], b [1,4H] (= b_ih + b_hh).
        wih = ld(prefix + "_wih")
        whh = ld(prefix + "_whh")
        b = ld(prefix + "_b")
        # Input projections hoisted off the recurrent critical path.
        pre = [_mm(x, wih) + b for x in xs]
        h = None
        c = None
        for t, p in enumerate(pre):
            g = p if t == 0 else p + _mm(h, whh)   # one [rows,H]@[H,4H] per step
            i_g = jax.nn.sigmoid(g[:, 0 * H:1 * H])
            f_g = jax.nn.sigmoid(g[:, 1 * H:2 * H])
            g_g = jnp.tanh(g[:, 2 * H:3 * H])
            o_g = jax.nn.sigmoid(g[:, 3 * H:4 * H])
            c = i_g * g_g if t == 0 else f_g * c + i_g * g_g
            h = o_g * jnp.tanh(c)
        return h

    # (1) comp-embedding MLP over the consumption-ordered comps slab.
    cemb_ref[...] = mlp(comps_ref[...], "comp", meta["n_comp"])

    # (2) default node / comp hidden states (overwritten where the LSTMs run).
    n_rows = sched["num_slots"] * B_pad
    nh_ref[...] = jnp.broadcast_to(ld("no_nodes"), (n_rows, E))
    ch_ref[...] = jnp.broadcast_to(ld("no_comps"), (n_rows, E))

    # (3) level-batched tree walk, deepest level first (static tree unrolled
    #     at trace time; all reads/writes are 8-row-aligned contiguous slices).
    for lvl in sched["plan"]:
        # children -> nodes_lstm, one call per (level, arity) group.
        # TODO(synk): merge mixed-arity groups by padding to max T + masking if
        # real trees show heavy arity mixing within a level.
        for grp in lvl["nodes_groups"]:
            xs = [results_ref[pl.ds(s * B_pad, g * B_pad), :]
                  for (s, g) in grp["child_blocks"]]
            h = lstm_last_h(xs, "nodes")
            for k, slot in enumerate(grp["parent_slots"]):
                nh_ref[pl.ds(slot * B_pad, B_pad), :] = h[k * B_pad:(k + 1) * B_pad, :]
        # comps -> comps_lstm, one call per (level, n_comps) group.
        for grp in lvl["comps_groups"]:
            xs = [cemb_ref[pl.ds(s * B_pad, g * B_pad), :]
                  for (s, g) in grp["comp_blocks"]]
            h = lstm_last_h(xs, "comps")
            for k, slot in enumerate(grp["parent_slots"]):
                ch_ref[pl.ds(slot * B_pad, B_pad), :] = h[k * B_pad:(k + 1) * B_pad, :]
        # concat MLP batched over every node of this level (zero-copy reads).
        base = lvl["base"] * B_pad
        rows = lvl["n"] * B_pad
        nh = nh_ref[pl.ds(base, rows), :]
        ch = ch_ref[pl.ds(base, rows), :]
        lp = loops_ref[pl.ds(base, rows), :]
        y = _mm(nh, ld("concat_w_n")) + _mm(ch, ld("concat_w_c")) + ld("concat_b_0")
        w_l = ld("concat_w_l")                         # [3, n1]
        for k in range(3):                             # K=3: VPU FMAs, not MXU
            y = y + lp[:, k:k + 1] * w_l[k:k + 1, :]
        y = _elu(y)
        for i in range(1, meta["n_concat"]):
            y = _elu(_mm(y, ld(f"concat_w_{i}")) + ld(f"concat_b_{i}"))
        results_ref[pl.ds(base, rows), :] = y

    # (4) regression MLP + predict (lane-padded dense 128-wide store).
    prog = results_ref[pl.ds(sched["root_slot"] * B_pad, B_pad), :]
    y = mlp(prog, "reg", meta["n_reg"])
    out = _mm(y, ld("pred_w")) + ld("pred_b")
    out_ref[...] = out.astype(out_ref.dtype)


# ---------------------------------------------------------------------------
# Static tree -> level-batched schedule + VMEM slot layout (pure Python)
# ---------------------------------------------------------------------------
def _as_int_list(x):
    if x is None:
        return []
    if isinstance(x, (int, np.integer)):
        return [int(x)]
    return [int(v) for v in np.asarray(x).reshape(-1)]


def _build_schedule(tree):
    """Slot-layout invariant: within level d (d>=1) nodes are ordered by
    (parent arity-group, timestep among siblings, parent), so every nodes-LSTM
    timestep input of level d-1 is a contiguous block of slots."""
    nodes = []

    def visit(node, depth):
        nid = len(nodes)
        rec = {
            "id": nid, "depth": depth, "child_ids": [],
            "comp_indices": tuple(_as_int_list(node.get("computations_indices")))
                            if bool(node.get("has_comps", False)) else (),
            "loop_index": _as_int_list(node["loop_index"])[0],
        }
        nodes.append(rec)
        for ch in (node.get("child_list") or []):
            rec["child_ids"].append(visit(ch, depth + 1))
        return nid

    root = visit(tree, 0)
    max_d = max(n["depth"] for n in nodes)

    # --- slot assignment (top-down) ---
    level_order = [[root]]
    for d in range(1, max_d + 1):
        groups = {}
        for pid in level_order[d - 1]:
            ch = nodes[pid]["child_ids"]
            if ch:
                groups.setdefault(len(ch), []).append(pid)
        order = []
        for arity in sorted(groups):
            plist = groups[arity]
            for t in range(arity):
                for pid in plist:
                    order.append(nodes[pid]["child_ids"][t])
        level_order.append(order)

    node_slot, level_base, s = {}, [], 0
    for d in range(max_d + 1):
        level_base.append(s)
        for nid in level_order[d]:
            node_slot[nid] = s
            s += 1
    num_slots = s

    # --- per-level processing plan (processed deepest level first) ---
    comp_consume, plan = [], []
    for d in range(max_d, -1, -1):
        order = level_order[d]
        lvl = {"base": level_base[d], "n": len(order),
               "nodes_groups": [], "comps_groups": []}
        ngroups, cgroups = {}, {}
        for nid in order:
            if nodes[nid]["child_ids"]:
                ngroups.setdefault(len(nodes[nid]["child_ids"]), []).append(nid)
            if nodes[nid]["comp_indices"]:
                cgroups.setdefault(len(nodes[nid]["comp_indices"]), []).append(nid)
        for arity in sorted(ngroups):
            plist = ngroups[arity]
            g = len(plist)
            child_blocks = []
            for t in range(arity):
                start = node_slot[nodes[plist[0]]["child_ids"][t]]
                for k, pid in enumerate(plist):       # layout-invariant check
                    assert node_slot[nodes[pid]["child_ids"][t]] == start + k
                child_blocks.append((start, g))
            lvl["nodes_groups"].append(
                {"parent_slots": [node_slot[p] for p in plist],
                 "child_blocks": child_blocks})
        for ncomp in sorted(cgroups):
            plist = cgroups[ncomp]
            g = len(plist)
            start = len(comp_consume)
            for t in range(ncomp):
                for pid in plist:
                    comp_consume.append(nodes[pid]["comp_indices"][t])
            lvl["comps_groups"].append(
                {"parent_slots": [node_slot[p] for p in plist],
                 "comp_blocks": [(start + t * g, g) for t in range(ncomp)]})
        plan.append(lvl)

    loop_order = [0] * num_slots
    for n in nodes:
        loop_order[node_slot[n["id"]]] = n["loop_index"]

    return {"plan": plan, "num_slots": num_slots, "comp_consume": comp_consume,
            "loop_order": loop_order, "root_slot": node_slot[root]}


# ---------------------------------------------------------------------------
# Parameter construction (mirrors the PyTorch module initializers)
# ---------------------------------------------------------------------------
def init_params(key, input_size, comp_embed_layer_sizes, output_size=1):
    E = comp_embed_layer_sizes[-1]
    comp_real = [input_size] + list(comp_embed_layer_sizes)
    reg_real = [E] + list(comp_embed_layer_sizes[-2:])
    concat_real = [2 * E + 3] + list(comp_embed_layer_sizes[-2:])

    def padded(sizes):          # keep first / last widths exact, pad the rest
        return [sizes[0]] + [_pad8(x) for x in sizes[1:-1]] + [sizes[-1]]

    comp_p, reg_p, concat_p = padded(comp_real), padded(reg_real), padded(concat_real)
    out_pad = ((output_size + 127) // 128) * 128

    keys = iter(jax.random.split(key, 512))
    nk = lambda: next(keys)

    def xavier(fan_in, fan_out, shape):
        a = math.sqrt(6.0 / (fan_in + fan_out))
        return jax.random.uniform(nk(), shape, jnp.float32, -a, a)

    def linear(in_real, out_real, in_pad, out_padw, zero_weight=False):
        w = jnp.zeros((in_pad, out_padw), jnp.float32)
        if not zero_weight:                         # nn.init.xavier_uniform_
            w = w.at[:in_real, :out_real].set(
                xavier(in_real, out_real, (in_real, out_real)))
        bnd = 1.0 / math.sqrt(in_real)              # nn.Linear default bias init
        b = jnp.zeros((1, out_padw), jnp.float32).at[:, :out_real].set(
            jax.random.uniform(nk(), (1, out_real), jnp.float32, -bnd, bnd))
        return w, b

    named = {}

    def add_stack(prefix, real, pad, zero_weight=False, start=0):
        for i in range(start, len(real) - 1):
            w, b = linear(real[i], real[i + 1], pad[i], pad[i + 1], zero_weight)
            named[f"{prefix}_w_{i}"] = w
            named[f"{prefix}_b_{i}"] = b

    add_stack("comp", comp_real, comp_p)
    add_stack("reg", reg_real, reg_p)

    # concat layer 0: zero weights (nn.init.zeros_), pre-split into the
    # (nodes | comps | loop) operand blocks used by the kernel.
    n1_real, n1 = concat_real[1], concat_p[1]
    named["concat_w_n"] = jnp.zeros((E, n1), jnp.float32)
    named["concat_w_c"] = jnp.zeros((E, n1), jnp.float32)
    named["concat_w_l"] = jnp.zeros((3, n1), jnp.float32)
    bnd0 = 1.0 / math.sqrt(2 * E + 3)
    named["concat_b_0"] = jnp.zeros((1, n1), jnp.float32).at[:, :n1_real].set(
        jax.random.uniform(nk(), (1, n1_real), jnp.float32, -bnd0, bnd0))
    add_stack("concat", concat_real, concat_p, zero_weight=True, start=1)

    # predict layer, lane-padded to a dense 128-wide store
    w, b = linear(reg_real[-1], output_size, reg_p[-1], out_pad)
    named["pred_w"], named["pred_b"] = w, b

    named["no_comps"] = xavier(E, 1, (1, E))        # nn.Parameter [1, E]
    named["no_nodes"] = xavier(E, 1, (1, E))

    def lstm(in_dim, hid):                          # PyTorch LSTM default init
        bnd = 1.0 / math.sqrt(hid)
        u = lambda shape: jax.random.uniform(nk(), shape, jnp.float32, -bnd, bnd)
        return (u((in_dim, 4 * hid)), u((hid, 4 * hid)),
                u((1, 4 * hid)) + u((1, 4 * hid)))  # b_ih + b_hh

    for prefix in ("comps", "nodes"):
        wih, whh, bsum = lstm(E, E)
        named[f"{prefix}_wih"] = wih
        named[f"{prefix}_whh"] = whh
        named[f"{prefix}_b"] = bsum

    meta = {"E": E, "n_comp": len(comp_real) - 1, "n_reg": len(reg_real) - 1,
            "n_concat": len(concat_real) - 1, "out_pad": out_pad,
            "output_size": output_size}
    return named, meta


def _pack_params(named):
    """Pack every parameter into ONE row-stacked f32 slab (one input DMA)."""
    max_c = max(int(a.shape[1]) for a in named.values())
    width = max(128, ((max_c + 127) // 128) * 128)
    blocks, layout, off = [], {}, 0
    for name, a in named.items():
        a = jnp.asarray(a, jnp.float32)
        r, c = int(a.shape[0]), int(a.shape[1])
        rpad = _pad8(r)
        blocks.append(jnp.zeros((rpad, width), jnp.float32).at[:r, :c].set(a))
        layout[name] = (off, r, c)
        off += rpad
    return jnp.concatenate(blocks, axis=0), layout


# ---------------------------------------------------------------------------
# Model wrapper (forward only; dropout = identity in eval mode)
# ---------------------------------------------------------------------------
class ModelRecursiveLSTMv2:
    def __init__(self, named_params, meta):
        self.params_slab, self.layout = _pack_params(named_params)
        self.meta = dict(meta)

    def __call__(self, tree, comps_tensor, loops_tensor):
        B, C, F = comps_tensor.shape
        _, L, LW = loops_tensor.shape
        assert LW == 3, "the concat layer expects 3 loop features"
        meta = self.meta
        E, out_pad = meta["E"], meta["out_pad"]
        sched = _build_schedule(tree)
        B_pad = _pad8(max(B, 1))

        # comps slab in comps-LSTM consumption order and loops slab in node-slot
        # order: every in-kernel read becomes a static, 8-row-aligned contiguous
        # slice (no gathers or concatenates inside the kernel).
        cc = sched["comp_consume"]
        if cc:
            comps_sel = jnp.take(comps_tensor, jnp.asarray(cc, jnp.int32), axis=1)
        else:
            comps_sel = jnp.zeros((B, 1, F), comps_tensor.dtype)
        n_cs = comps_sel.shape[1]
        comps_cm = jnp.transpose(comps_sel, (1, 0, 2)).astype(jnp.float32)
        comps_cm = jnp.pad(comps_cm, ((0, 0), (0, B_pad - B), (0, 0)))
        comps_cm = comps_cm.reshape(n_cs * B_pad, F)

        lo = jnp.asarray(sched["loop_order"], jnp.int32)
        loops_cm = jnp.transpose(jnp.take(loops_tensor, lo, axis=1),
                                 (1, 0, 2)).astype(jnp.float32)
        loops_cm = jnp.pad(loops_cm, ((0, 0), (0, B_pad - B), (0, 0)))
        loops_cm = loops_cm.reshape(sched["num_slots"] * B_pad, LW)

        kernel = functools.partial(_forward_kernel, layout=self.layout,
                                   sched=sched, meta=meta, B_pad=B_pad)
        n_rows = sched["num_slots"] * B_pad
        out = pl.pallas_call(
            kernel,
            out_shape=jax.ShapeDtypeStruct((B_pad, out_pad), jnp.float32),
            scratch_shapes=[
                pltpu.VMEM((n_rows, E), jnp.float32),         # node results
                pltpu.VMEM((n_rows, E), jnp.float32),         # nodes_h
                pltpu.VMEM((n_rows, E), jnp.float32),         # comps_h
                pltpu.VMEM((n_cs * B_pad, E), jnp.float32),   # comp embeddings
            ],
            compiler_params=pltpu.CompilerParams(
                vmem_limit_bytes=32 * 1024 * 1024),
        )(self.params_slab, comps_cm, loops_cm)
        # TODO(synk): if B (or trees-per-call) grows, add a 'parallel' grid axis
        # over batch so v7x's two TensorCores split the work and per-core VMEM
        # stays bounded; at B<=8 a single launch is fastest.
        return out[:B, :meta["output_size"]]


# ---------------------------------------------------------------------------
if __name__ == "__main__":
    key = jax.random.PRNGKey(0)
    kp, kc, kl = jax.random.split(key, 3)

    input_size = 16
    comp_embed_layer_sizes = [64, 48, 32, 32]        # embedding size E = 32
    named, meta = init_params(kp, input_size, comp_embed_layer_sizes, output_size=1)
    model = ModelRecursiveLSTMv2(named, meta)

    B, num_comps, num_loops = 2, 4, 3
    comps_tensor = jax.random.normal(kc, (B, num_comps, input_size), jnp.float32)
    loops_tensor = jax.random.normal(kl, (B, num_loops, 3), jnp.float32)

    # Static program tree (its structure drives the recursion, as in PyTorch).
    tree = {
        "child_list": [
            {"child_list": [], "has_comps": True,
             "computations_indices": [0, 1], "loop_index": 1},
            {"child_list": [], "has_comps": True,
             "computations_indices": [2, 3], "loop_index": 2},
        ],
        "has_comps": False,
        "computations_indices": [],
        "loop_index": 0,
    }

    out = model(tree, comps_tensor, loops_tensor)
    jax.block_until_ready(out)
    assert out.shape == (B, 1), out.shape
    assert bool(jnp.all(jnp.isfinite(out)))
    print("KERNEL_OK")
</pallas_src>

<mosaic_0001>
module attributes {stable_mosaic.version = 11 : i64} {
  func.func @_forward_kernel(%arg0: memref<592x128xf32, #tpu.memory_space<vmem>>, %arg1: memref<32x16xf32, #tpu.memory_space<vmem>>, %arg2: memref<24x3xf32, #tpu.memory_space<vmem>>, %arg3: memref<8x128xf32, #tpu.memory_space<vmem>>, %arg4: memref<24x32xf32, #tpu.memory_space<vmem>>, %arg5: memref<24x32xf32, #tpu.memory_space<vmem>>, %arg6: memref<24x32xf32, #tpu.memory_space<vmem>>, %arg7: memref<32x32xf32, #tpu.memory_space<vmem>>) attributes {dimension_semantics = [], scalar_prefetch = 0 : i64, scratch_operands = 4 : i64, tpu.core_type = #tpu.core_type<tc>} {
    %c0 = arith.constant 0 : index
    %c0_0 = arith.constant 0 : index
    %0 = vector.load %arg1[%c0, %c0_0] : memref<32x16xf32, #tpu.memory_space<vmem>>, vector<32x16xf32>
    %c0_1 = arith.constant 0 : index
    %c0_2 = arith.constant 0 : index
    %1 = vector.load %arg0[%c0_1, %c0_2] : memref<592x128xf32, #tpu.memory_space<vmem>>, vector<16x64xf32>
    %2 = arith.truncf %0 : vector<32x16xf32> to vector<32x16xbf16>
    %3 = arith.truncf %1 : vector<16x64xf32> to vector<16x64xbf16>
    %cst = arith.constant dense<0.000000e+00> : vector<32x64xf32>
    %4 = tpu.matmul %2, %3, %cst {dimension_numbers = #tpu.dot_dimension_numbers<[1], [0], [0], [1], [0, 0, 1, 1], [], []>} : vector<32x16xbf16>, vector<16x64xbf16>, vector<32x64xf32> -> vector<32x64xf32>
    %c16 = arith.constant 16 : index
    %c0_3 = arith.constant 0 : index
    %5 = vector.load %arg0[%c16, %c0_3] : memref<592x128xf32, #tpu.memory_space<vmem>>, vector<1x64xf32>
    %6 = vector.broadcast %5 : vector<1x64xf32> to vector<32x64xf32>
    %7 = arith.addf %4, %6 : vector<32x64xf32>
    %cst_4 = arith.constant 0.000000e+00 : f32
    %8 = vector.broadcast %cst_4 : f32 to vector<32x64xf32>
    %9 = arith.minimumf %7, %8 : vector<32x64xf32>
    %10 = math.exp %9 : vector<32x64xf32>
    %cst_5 = arith.constant 1.000000e+00 : f32
    %11 = vector.broadcast %cst_5 : f32 to vector<32x64xf32>
    %12 = arith.subf %10, %11 : vector<32x64xf32>
    %cst_6 = arith.constant -1.000000e-03 : f32
    %13 = vector.broadcast %cst_6 : f32 to vector<32x64xf32>
    %14 = arith.cmpf ogt, %9, %13 : vector<32x64xf32>
    %cst_7 = arith.constant 5.000000e-01 : f32
    %15 = vector.broadcast %cst_7 : f32 to vector<32x64xf32>
    %16 = arith.mulf %15, %9 : vector<32x64xf32>
    %17 = arith.mulf %16, %9 : vector<32x64xf32>
    %18 = arith.addf %9, %17 : vector<32x64xf32>
    %19 = arith.select %14, %18, %12 : vector<32x64xi1>, vector<32x64xf32>
    %cst_8 = arith.constant 0.000000e+00 : f32
    %20 = vector.broadcast %cst_8 : f32 to vector<32x64xf32>
    %21 = arith.cmpf ogt, %7, %20 : vector<32x64xf32>
    %22 = arith.select %21, %7, %19 : vector<32x64xi1>, vector<32x64xf32>
    %c24 = arith.constant 24 : index
    %c0_9 = arith.constant 0 : index
    %23 = vector.load %arg0[%c24, %c0_9] : memref<592x128xf32, #tpu.memory_space<vmem>>, vector<64x48xf32>
    %24 = arith.truncf %22 : vector<32x64xf32> to vector<32x64xbf16>
    %25 = arith.truncf %23 : vector<64x48xf32> to vector<64x48xbf16>
    %cst_10 = arith.constant dense<0.000000e+00> : vector<32x48xf32>
    %26 = tpu.matmul %24, %25, %cst_10 {dimension_numbers = #tpu.dot_dimension_numbers<[1], [0], [0], [1], [0, 0, 1, 1], [], []>} : vector<32x64xbf16>, vector<64x48xbf16>, vector<32x48xf32> -> vector<32x48xf32>
    %c88 = arith.constant 88 : index
    %c0_11 = arith.constant 0 : index
    %27 = vector.load %arg0[%c88, %c0_11] : memref<592x128xf32, #tpu.memory_space<vmem>>, vector<1x48xf32>
    %28 = vector.broadcast %27 : vector<1x48xf32> to vector<32x48xf32>
    %29 = arith.addf %26, %28 : vector<32x48xf32>
    %cst_12 = arith.constant 0.000000e+00 : f32
    %30 = vector.broadcast %cst_12 : f32 to vector<32x48xf32>
    %31 = arith.minimumf %29, %30 : vector<32x48xf32>
    %32 = math.exp %31 : vector<32x48xf32>
    %cst_13 = arith.constant 1.000000e+00 : f32
    %33 = vector.broadcast %cst_13 : f32 to vector<32x48xf32>
    %34 = arith.subf %32, %33 : vector<32x48xf32>
    %cst_14 = arith.constant -1.000000e-03 : f32
    %35 = vector.broadcast %cst_14 : f32 to vector<32x48xf32>
    %36 = arith.cmpf ogt, %31, %35 : vector<32x48xf32>
    %cst_15 = arith.constant 5.000000e-01 : f32
    %37 = vector.broadcast %cst_15 : f32 to vector<32x48xf32>
    %38 = arith.mulf %37, %31 : vector<32x48xf32>
    %39 = arith.mulf %38, %31 : vector<32x48xf32>
    %40 = arith.addf %31, %39 : vector<32x48xf32>
    %41 = arith.select %36, %40, %34 : vector<32x48xi1>, vector<32x48xf32>
    %cst_16 = arith.constant 0.000000e+00 : f32
    %42 = vector.broadcast %cst_16 : f32 to vector<32x48xf32>
    %43 = arith.cmpf ogt, %29, %42 : vector<32x48xf32>
    %44 = arith.select %43, %29, %41 : vector<32x48xi1>, vector<32x48xf32>
    %c96 = arith.constant 96 : index
    %c0_17 = arith.constant 0 : index
    %45 = vector.load %arg0[%c96, %c0_17] : memref<592x128xf32, #tpu.memory_space<vmem>>, vector<48x32xf32>
    %46 = arith.truncf %44 : vector<32x48xf32> to vector<32x48xbf16>
    %47 = arith.truncf %45 : vector<48x32xf32> to vector<48x32xbf16>
    %cst_18 = arith.constant dense<0.000000e+00> : vector<32x32xf32>
    %48 = tpu.matmul %46, %47, %cst_18 {dimension_numbers = #tpu.dot_dimension_numbers<[1], [0], [0], [1], [0, 0, 1, 1], [], []>} : vector<32x48xbf16>, vector<48x32xbf16>, vector<32x32xf32> -> vector<32x32xf32>
    %c144 = arith.constant 144 : index
    %c0_19 = arith.constant 0 : index
    %49 = vector.load %arg0[%c144, %c0_19] : memref<592x128xf32, #tpu.memory_space<vmem>>, vector<1x32xf32>
    %50 = vector.broadcast %49 : vector<1x32xf32> to vector<32x32xf32>
    %51 = arith.addf %48, %50 : vector<32x32xf32>
    %cst_20 = arith.constant 0.000000e+00 : f32
    %52 = vector.broadcast %cst_20 : f32 to vector<32x32xf32>
    %53 = arith.minimumf %51, %52 : vector<32x32xf32>
    %54 = math.exp %53 : vector<32x32xf32>
    %cst_21 = arith.constant 1.000000e+00 : f32
    %55 = vector.broadcast %cst_21 : f32 to vector<32x32xf32>
    %56 = arith.subf %54, %55 : vector<32x32xf32>
    %cst_22 = arith.constant -1.000000e-03 : f32
    %57 = vector.broadcast %cst_22 : f32 to vector<32x32xf32>
    %58 = arith.cmpf ogt, %53, %57 : vector<32x32xf32>
    %cst_23 = arith.constant 5.000000e-01 : f32
    %59 = vector.broadcast %cst_23 : f32 to vector<32x32xf32>
    %60 = arith.mulf %59, %53 : vector<32x32xf32>
    %61 = arith.mulf %60, %53 : vector<32x32xf32>
    %62 = arith.addf %53, %61 : vector<32x32xf32>
    %63 = arith.select %58, %62, %56 : vector<32x32xi1>, vector<32x32xf32>
    %cst_24 = arith.constant 0.000000e+00 : f32
    %64 = vector.broadcast %cst_24 : f32 to vector<32x32xf32>
    %65 = arith.cmpf ogt, %51, %64 : vector<32x32xf32>
    %66 = arith.select %65, %51, %63 : vector<32x32xi1>, vector<32x32xf32>
    %c152 = arith.constant 152 : index
    %c0_25 = arith.constant 0 : index
    %67 = vector.load %arg0[%c152, %c0_25] : memref<592x128xf32, #tpu.memory_space<vmem>>, vector<32x32xf32>
    %68 = arith.truncf %66 : vector<32x32xf32> to vector<32x32xbf16>
    %69 = arith.truncf %67 : vector<32x32xf32> to vector<32x32xbf16>
    %cst_26 = arith.constant dense<0.000000e+00> : vector<32x32xf32>
    %70 = tpu.matmul %68, %69, %cst_26 {dimension_numbers = #tpu.dot_dimension_numbers<[1], [0], [0], [1], [0, 0, 1, 1], [], []>} : vector<32x32xbf16>, vector<32x32xbf16>, vector<32x32xf32> -> vector<32x32xf32>
    %c184 = arith.constant 184 : index
    %c0_27 = arith.constant 0 : index
    %71 = vector.load %arg0[%c184, %c0_27] : memref<592x128xf32, #tpu.memory_space<vmem>>, vector<1x32xf32>
    %72 = vector.broadcast %71 : vector<1x32xf32> to vector<32x32xf32>
    %73 = arith.addf %70, %72 : vector<32x32xf32>
    %cst_28 = arith.constant 0.000000e+00 : f32
    %74 = vector.broadcast %cst_28 : f32 to vector<32x32xf32>
    %75 = arith.minimumf %73, %74 : vector<32x32xf32>
    %76 = math.exp %75 : vector<32x32xf32>
    %cst_29 = arith.constant 1.000000e+00 : f32
    %77 = vector.broadcast %cst_29 : f32 to vector<32x32xf32>
    %78 = arith.subf %76, %77 : vector<32x32xf32>
    %cst_30 = arith.constant -1.000000e-03 : f32
    %79 = vector.broadcast %cst_30 : f32 to vector<32x32xf32>
    %80 = arith.cmpf ogt, %75, %79 : vector<32x32xf32>
    %cst_31 = arith.constant 5.000000e-01 : f32
    %81 = vector.broadcast %cst_31 : f32 to vector<32x32xf32>
    %82 = arith.mulf %81, %75 : vector<32x32xf32>
    %83 = arith.mulf %82, %75 : vector<32x32xf32>
    %84 = arith.addf %75, %83 : vector<32x32xf32>
    %85 = arith.select %80, %84, %78 : vector<32x32xi1>, vector<32x32xf32>
    %cst_32 = arith.constant 0.000000e+00 : f32
    %86 = vector.broadcast %cst_32 : f32 to vector<32x32xf32>
    %87 = arith.cmpf ogt, %73, %86 : vector<32x32xf32>
    %88 = arith.select %87, %73, %85 : vector<32x32xi1>, vector<32x32xf32>
    %c0_33 = arith.constant 0 : index
    %c0_34 = arith.constant 0 : index
    %89 = vector.load %arg7[%c0_33, %c0_34] : memref<32x32xf32, #tpu.memory_space<vmem>>, vector<32x32xf32>
    tpu.vector_store %arg7[%c0_33, %c0_34], %88 {strides = array<i32>} : memref<32x32xf32, #tpu.memory_space<vmem>>, vector<32x32xf32>,
    %c440 = arith.constant 440 : index
    %c0_35 = arith.constant 0 : index
    %90 = vector.load %arg0[%c440, %c0_35] : memref<592x128xf32, #tpu.memory_space<vmem>>, vector<1x32xf32>
    %91 = vector.shape_cast %90 : vector<1x32xf32> to vector<1x32xf32>
    %92 = vector.broadcast %91 : vector<1x32xf32> to vector<24x32xf32>
    %c0_36 = arith.constant 0 : index
    %c0_37 = arith.constant 0 : index
    %93 = vector.load %arg5[%c0_36, %c0_37] : memref<24x32xf32, #tpu.memory_space<vmem>>, vector<24x32xf32>
    tpu.vector_store %arg5[%c0_36, %c0_37], %92 {strides = array<i32>} : memref<24x32xf32, #tpu.memory_space<vmem>>, vector<24x32xf32>,
    %c432 = arith.constant 432 : index
    %c0_38 = arith.constant 0 : index
    %94 = vector.load %arg0[%c432, %c0_38] : memref<592x128xf32, #tpu.memory_space<vmem>>, vector<1x32xf32>
    %95 = vector.shape_cast %94 : vector<1x32xf32> to vector<1x32xf32>
    %96 = vector.broadcast %95 : vector<1x32xf32> to vector<24x32xf32>
    %c0_39 = arith.constant 0 : index
    %c0_40 = arith.constant 0 : index
    %97 = vector.load %arg6[%c0_39, %c0_40] : memref<24x32xf32, #tpu.memory_space<vmem>>, vector<24x32xf32>
    tpu.vector_store %arg6[%c0_39, %c0_40], %96 {strides = array<i32>} : memref<24x32xf32, #tpu.memory_space<vmem>>, vector<24x32xf32>,
    %c0_41 = arith.constant 0 : index
    %c0_42 = arith.constant 0 : index
    %98 = vector.load %arg7[%c0_41, %c0_42] : memref<32x32xf32, #tpu.memory_space<vmem>>, vector<16x32xf32>
    %c16_43 = arith.constant 16 : index
    %c0_44 = arith.constant 0 : index
    %99 = vector.load %arg7[%c16_43, %c0_44] : memref<32x32xf32, #tpu.memory_space<vmem>>, vector<16x32xf32>
    %c448 = arith.constant 448 : index
    %c0_45 = arith.constant 0 : index
    %100 = vector.load %arg0[%c448, %c0_45] : memref<592x128xf32, #tpu.memory_space<vmem>>, vector<32x128xf32>
    %c480 = arith.constant 480 : index
    %c0_46 = arith.constant 0 : index
    %101 = vector.load %arg0[%c480, %c0_46] : memref<592x128xf32, #tpu.memory_space<vmem>>, vector<32x128xf32>
    %c512 = arith.constant 512 : index
    %c0_47 = arith.constant 0 : index
    %102 = vector.load %arg0[%c512, %c0_47] : memref<592x128xf32, #tpu.memory_space<vmem>>, vector<1x128xf32>
    %103 = arith.truncf %98 : vector<16x32xf32> to vector<16x32xbf16>
    %104 = arith.truncf %100 : vector<32x128xf32> to vector<32x128xbf16>
    %cst_48 = arith.constant dense<0.000000e+00> : vector<16x128xf32>
    %105 = tpu.matmul %103, %104, %cst_48 {dimension_numbers = #tpu.dot_dimension_numbers<[1], [0], [0], [1], [0, 0, 1, 1], [], []>} : vector<16x32xbf16>, vector<32x128xbf16>, vector<16x128xf32> -> vector<16x128xf32>
    %106 = vector.broadcast %102 : vector<1x128xf32> to vector<16x128xf32>
    %107 = arith.addf %105, %106 : vector<16x128xf32>
    %108 = arith.truncf %99 : vector<16x32xf32> to vector<16x32xbf16>
    %109 = arith.truncf %100 : vector<32x128xf32> to vector<32x128xbf16>
    %cst_49 = arith.constant dense<0.000000e+00> : vector<16x128xf32>
    %110 = tpu.matmul %108, %109, %cst_49 {dimension_numbers = #tpu.dot_dimension_numbers<[1], [0], [0], [1], [0, 0, 1, 1], [], []>} : vector<16x32xbf16>, vector<32x128xbf16>, vector<16x128xf32> -> vector<16x128xf32>
    %111 = vector.broadcast %102 : vector<1x128xf32> to vector<16x128xf32>
    %112 = arith.addf %110, %111 : vector<16x128xf32>
    %113 = vector.extract_strided_slice %107 {offsets = [0, 0], sizes = [16, 32], strides = [1, 1]} : vector<16x128xf32> to vector<16x32xf32>
    %114 = arith.negf %113 : vector<16x32xf32>
    %115 = math.exp %114 : vector<16x32xf32>
    %cst_50 = arith.constant 1.000000e+00 : f32
    %116 = vector.broadcast %cst_50 : f32 to vector<16x32xf32>
    %117 = arith.addf %116, %115 : vector<16x32xf32>
    %118 = arith.divf %116, %117 : vector<16x32xf32>
    %119 = vector.extract_strided_slice %107 {offsets = [0, 64], sizes = [16, 32], strides = [1, 1]} : vector<16x128xf32> to vector<16x32xf32>
    %120 = math.tanh %119 : vector<16x32xf32>
    %121 = vector.extract_strided_slice %107 {offsets = [0, 96], sizes = [16, 32], strides = [1, 1]} : vector<16x128xf32> to vector<16x32xf32>
    %122 = arith.negf %121 : vector<16x32xf32>
    %123 = math.exp %122 : vector<16x32xf32>
    %cst_51 = arith.constant 1.000000e+00 : f32
    %124 = vector.broadcast %cst_51 : f32 to vector<16x32xf32>
    %125 = arith.addf %124, %123 : vector<16x32xf32>
    %126 = arith.divf %124, %125 : vector<16x32xf32>
    %127 = arith.mulf %118, %120 : vector<16x32xf32>
    %128 = math.tanh %127 : vector<16x32xf32>
    %129 = arith.mulf %126, %128 : vector<16x32xf32>
    %130 = arith.truncf %129 : vector<16x32xf32> to vector<16x32xbf16>
    %131 = arith.truncf %101 : vector<32x128xf32> to vector<32x128xbf16>
    %cst_52 = arith.constant dense<0.000000e+00> : vector<16x128xf32>
    %132 = tpu.matmul %130, %131, %cst_52 {dimension_numbers = #tpu.dot_dimension_numbers<[1], [0], [0], [1], [0, 0, 1, 1], [], []>} : vector<16x32xbf16>, vector<32x128xbf16>, vector<16x128xf32> -> vector<16x128xf32>
    %133 = arith.addf %112, %132 : vector<16x128xf32>
    %134 = vector.extract_strided_slice %133 {offsets = [0, 0], sizes = [16, 32], strides = [1, 1]} : vector<16x128xf32> to vector<16x32xf32>
    %135 = arith.negf %134 : vector<16x32xf32>
    %136 = math.exp %135 : vector<16x32xf32>
    %cst_53 = arith.constant 1.000000e+00 : f32
    %137 = vector.broadcast %cst_53 : f32 to vector<16x32xf32>
    %138 = arith.addf %137, %136 : vector<16x32xf32>
    %139 = arith.divf %137, %138 : vector<16x32xf32>
    %140 = vector.extract_strided_slice %133 {offsets = [0, 32], sizes = [16, 32], strides = [1, 1]} : vector<16x128xf32> to vector<16x32xf32>
    %141 = arith.negf %140 : vector<16x32xf32>
    %142 = math.exp %141 : vector<16x32xf32>
    %cst_54 = arith.constant 1.000000e+00 : f32
    %143 = vector.broadcast %cst_54 : f32 to vector<16x32xf32>
    %144 = arith.addf %143, %142 : vector<16x32xf32>
    %145 = arith.divf %143, %144 : vector<16x32xf32>
    %146 = vector.extract_strided_slice %133 {offsets = [0, 64], sizes = [16, 32], strides = [1, 1]} : vector<16x128xf32> to vector<16x32xf32>
    %147 = math.tanh %146 : vector<16x32xf32>
    %148 = vector.extract_strided_slice %133 {offsets = [0, 96], sizes = [16, 32], strides = [1, 1]} : vector<16x128xf32> to vector<16x32xf32>
    %149 = arith.negf %148 : vector<16x32xf32>
    %150 = math.exp %149 : vector<16x32xf32>
    %cst_55 = arith.constant 1.000000e+00 : f32
    %151 = vector.broadcast %cst_55 : f32 to vector<16x32xf32>
    %152 = arith.addf %151, %150 : vector<16x32xf32>
    %153 = arith.divf %151, %152 : vector<16x32xf32>
    %154 = arith.mulf %145, %127 : vector<16x32xf32>
    %155 = arith.mulf %139, %147 : vector<16x32xf32>
    %156 = arith.addf %154, %155 : vector<16x32xf32>
    %157 = math.tanh %156 : vector<16x32xf32>
    %158 = arith.mulf %153, %157 : vector<16x32xf32>
    %159 = vector.extract_strided_slice %158 {offsets = [0, 0], sizes = [8, 32], strides = [1, 1]} : vector<16x32xf32> to vector<8x32xf32>
    %c8 = arith.constant 8 : index
    %c0_56 = arith.constant 0 : index
    %160 = vector.load %arg6[%c8, %c0_56] : memref<24x32xf32, #tpu.memory_space<vmem>>, vector<8x32xf32>
    tpu.vector_store %arg6[%c8, %c0_56], %159 {strides = array<i32>} : memref<24x32xf32, #tpu.memory_space<vmem>>, vector<8x32xf32>,
    %161 = vector.extract_strided_slice %158 {offsets = [8, 0], sizes = [8, 32], strides = [1, 1]} : vector<16x32xf32> to vector<8x32xf32>
    %c16_57 = arith.constant 16 : index
    %c0_58 = arith.constant 0 : index
    %162 = vector.load %arg6[%c16_57, %c0_58] : memref<24x32xf32, #tpu.memory_space<vmem>>, vector<8x32xf32>
    tpu.vector_store %arg6[%c16_57, %c0_58], %161 {strides = array<i32>} : memref<24x32xf32, #tpu.memory_space<vmem>>, vector<8x32xf32>,
    %c8_59 = arith.constant 8 : index
    %c0_60 = arith.constant 0 : index
    %163 = vector.load %arg5[%c8_59, %c0_60] : memref<24x32xf32, #tpu.memory_space<vmem>>, vector<16x32xf32>
    %c8_61 = arith.constant 8 : index
    %c0_62 = arith.constant 0 : index
    %164 = vector.load %arg6[%c8_61, %c0_62] : memref<24x32xf32, #tpu.memory_space<vmem>>, vector<16x32xf32>
    %c8_63 = arith.constant 8 : index
    %c0_64 = arith.constant 0 : index
    %165 = vector.load %arg2[%c8_63, %c0_64] : memref<24x3xf32, #tpu.memory_space<vmem>>, vector<16x3xf32>
    %c272 = arith.constant 272 : index
    %c0_65 = arith.constant 0 : index
    %166 = vector.load %arg0[%c272, %c0_65] : memref<592x128xf32, #tpu.memory_space<vmem>>, vector<32x32xf32>
    %167 = arith.truncf %163 : vector<16x32xf32> to vector<16x32xbf16>
    %168 = arith.truncf %166 : vector<32x32xf32> to vector<32x32xbf16>
    %cst_66 = arith.constant dense<0.000000e+00> : vector<16x32xf32>
    %169 = tpu.matmul %167, %168, %cst_66 {dimension_numbers = #tpu.dot_dimension_numbers<[1], [0], [0], [1], [0, 0, 1, 1], [], []>} : vector<16x32xbf16>, vector<32x32xbf16>, vector<16x32xf32> -> vector<16x32xf32>
    %c304 = arith.constant 304 : index
    %c0_67 = arith.constant 0 : index
    %170 = vector.load %arg0[%c304, %c0_67] : memref<592x128xf32, #tpu.memory_space<vmem>>, vector<32x32xf32>
    %171 = arith.truncf %164 : vector<16x32xf32> to vector<16x32xbf16>
    %172 = arith.truncf %170 : vector<32x32xf32> to vector<32x32xbf16>
    %cst_68 = arith.constant dense<0.000000e+00> : vector<16x32xf32>
    %173 = tpu.matmul %171, %172, %cst_68 {dimension_numbers = #tpu.dot_dimension_numbers<[1], [0], [0], [1], [0, 0, 1, 1], [], []>} : vector<16x32xbf16>, vector<32x32xbf16>, vector<16x32xf32> -> vector<16x32xf32>
    %174 = arith.addf %169, %173 : vector<16x32xf32>
    %c344 = arith.constant 344 : index
    %c0_69 = arith.constant 0 : index
    %175 = vector.load %arg0[%c344, %c0_69] : memref<592x128xf32, #tpu.memory_space<vmem>>, vector<1x32xf32>
    %176 = vector.broadcast %175 : vector<1x32xf32> to vector<16x32xf32>
    %177 = arith.addf %174, %176 : vector<16x32xf32>
    %c336 = arith.constant 336 : index
    %c0_70 = arith.constant 0 : index
    %178 = vector.load %arg0[%c336, %c0_70] : memref<592x128xf32, #tpu.memory_space<vmem>>, vector<3x32xf32>
    %179 = vector.extract_strided_slice %165 {offsets = [0, 0], sizes = [16, 1], strides = [1, 1]} : vector<16x3xf32> to vector<16x1xf32>
    %180 = vector.extract_strided_slice %178 {offsets = [0, 0], sizes = [1, 32], strides = [1, 1]} : vector<3x32xf32> to vector<1x32xf32>
    %181 = vector.broadcast %179 : vector<16x1xf32> to vector<16x32xf32>
    %182 = vector.broadcast %180 : vector<1x32xf32> to vector<16x32xf32>
    %183 = arith.mulf %181, %182 : vector<16x32xf32>
    %184 = arith.addf %177, %183 : vector<16x32xf32>
    %185 = vector.extract_strided_slice %165 {offsets = [0, 1], sizes = [16, 1], strides = [1, 1]} : vector<16x3xf32> to vector<16x1xf32>
    %186 = vector.extract_strided_slice %178 {offsets = [1, 0], sizes = [1, 32], strides = [1, 1]} : vector<3x32xf32> to vector<1x32xf32>
    %187 = vector.broadcast %185 : vector<16x1xf32> to vector<16x32xf32>
    %188 = vector.broadcast %186 : vector<1x32xf32> to vector<16x32xf32>
    %189 = arith.mulf %187, %188 : vector<16x32xf32>
    %190 = arith.addf %184, %189 : vector<16x32xf32>
    %191 = vector.extract_strided_slice %165 {offsets = [0, 2], sizes = [16, 1], strides = [1, 1]} : vector<16x3xf32> to vector<16x1xf32>
    %192 = vector.extract_strided_slice %178 {offsets = [2, 0], sizes = [1, 32], strides = [1, 1]} : vector<3x32xf32> to vector<1x32xf32>
    %193 = vector.broadcast %191 : vector<16x1xf32> to vector<16x32xf32>
    %194 = vector.broadcast %192 : vector<1x32xf32> to vector<16x32xf32>
    %195 = arith.mulf %193, %194 : vector<16x32xf32>
    %196 = arith.addf %190, %195 : vector<16x32xf32>
    %cst_71 = arith.constant 0.000000e+00 : f32
    %197 = vector.broadcast %cst_71 : f32 to vector<16x32xf32>
    %198 = arith.minimumf %196, %197 : vector<16x32xf32>
    %199 = math.exp %198 : vector<16x32xf32>
    %cst_72 = arith.constant 1.000000e+00 : f32
    %200 = vector.broadcast %cst_72 : f32 to vector<16x32xf32>
    %201 = arith.subf %199, %200 : vector<16x32xf32>
    %cst_73 = arith.constant -1.000000e-03 : f32
    %202 = vector.broadcast %cst_73 : f32 to vector<16x32xf32>
    %203 = arith.cmpf ogt, %198, %202 : vector<16x32xf32>
    %cst_74 = arith.constant 5.000000e-01 : f32
    %204 = vector.broadcast %cst_74 : f32 to vector<16x32xf32>
    %205 = arith.mulf %204, %198 : vector<16x32xf32>
    %206 = arith.mulf %205, %198 : vector<16x32xf32>
    %207 = arith.addf %198, %206 : vector<16x32xf32>
    %208 = arith.select %203, %207, %201 : vector<16x32xi1>, vector<16x32xf32>
    %cst_75 = arith.constant 0.000000e+00 : f32
    %209 = vector.broadcast %cst_75 : f32 to vector<16x32xf32>
    %210 = arith.cmpf ogt, %196, %209 : vector<16x32xf32>
    %211 = arith.select %210, %196, %208 : vector<16x32xi1>, vector<16x32xf32>
    %c352 = arith.constant 352 : index
    %c0_76 = arith.constant 0 : index
    %212 = vector.load %arg0[%c352, %c0_76] : memref<592x128xf32, #tpu.memory_space<vmem>>, vector<32x32xf32>
    %213 = arith.truncf %211 : vector<16x32xf32> to vector<16x32xbf16>
    %214 = arith.truncf %212 : vector<32x32xf32> to vector<32x32xbf16>
    %cst_77 = arith.constant dense<0.000000e+00> : vector<16x32xf32>
    %215 = tpu.matmul %213, %214, %cst_77 {dimension_numbers = #tpu.dot_dimension_numbers<[1], [0], [0], [1], [0, 0, 1, 1], [], []>} : vector<16x32xbf16>, vector<32x32xbf16>, vector<16x32xf32> -> vector<16x32xf32>
    %c384 = arith.constant 384 : index
    %c0_78 = arith.constant 0 : index
    %216 = vector.load %arg0[%c384, %c0_78] : memref<592x128xf32, #tpu.memory_space<vmem>>, vector<1x32xf32>
    %217 = vector.broadcast %216 : vector<1x32xf32> to vector<16x32xf32>
    %218 = arith.addf %215, %217 : vector<16x32xf32>
    %cst_79 = arith.constant 0.000000e+00 : f32
    %219 = vector.broadcast %cst_79 : f32 to vector<16x32xf32>
    %220 = arith.minimumf %218, %219 : vector<16x32xf32>
    %221 = math.exp %220 : vector<16x32xf32>
    %cst_80 = arith.constant 1.000000e+00 : f32
    %222 = vector.broadcast %cst_80 : f32 to vector<16x32xf32>
    %223 = arith.subf %221, %222 : vector<16x32xf32>
    %cst_81 = arith.constant -1.000000e-03 : f32
    %224 = vector.broadcast %cst_81 : f32 to vector<16x32xf32>
    %225 = arith.cmpf ogt, %220, %224 : vector<16x32xf32>
    %cst_82 = arith.constant 5.000000e-01 : f32
    %226 = vector.broadcast %cst_82 : f32 to vector<16x32xf32>
    %227 = arith.mulf %226, %220 : vector<16x32xf32>
    %228 = arith.mulf %227, %220 : vector<16x32xf32>
    %229 = arith.addf %220, %228 : vector<16x32xf32>
    %230 = arith.select %225, %229, %223 : vector<16x32xi1>, vector<16x32xf32>
    %cst_83 = arith.constant 0.000000e+00 : f32
    %231 = vector.broadcast %cst_83 : f32 to vector<16x32xf32>
    %232 = arith.cmpf ogt, %218, %231 : vector<16x32xf32>
    %233 = arith.select %232, %218, %230 : vector<16x32xi1>, vector<16x32xf32>
    %c8_84 = arith.constant 8 : index
    %c0_85 = arith.constant 0 : index
    %234 = vector.load %arg4[%c8_84, %c0_85] : memref<24x32xf32, #tpu.memory_space<vmem>>, vector<16x32xf32>
    tpu.vector_store %arg4[%c8_84, %c0_85], %233 {strides = array<i32>} : memref<24x32xf32, #tpu.memory_space<vmem>>, vector<16x32xf32>,
    %c8_86 = arith.constant 8 : index
    %c0_87 = arith.constant 0 : index
    %235 = vector.load %arg4[%c8_86, %c0_87] : memref<24x32xf32, #tpu.memory_space<vmem>>, vector<8x32xf32>
    %c16_88 = arith.constant 16 : index
    %c0_89 = arith.constant 0 : index
    %236 = vector.load %arg4[%c16_88, %c0_89] : memref<24x32xf32, #tpu.memory_space<vmem>>, vector<8x32xf32>
    %c520 = arith.constant 520 : index
    %c0_90 = arith.constant 0 : index
    %237 = vector.load %arg0[%c520, %c0_90] : memref<592x128xf32, #tpu.memory_space<vmem>>, vector<32x128xf32>
    %c552 = arith.constant 552 : index
    %c0_91 = arith.constant 0 : index
    %238 = vector.load %arg0[%c552, %c0_91] : memref<592x128xf32, #tpu.memory_space<vmem>>, vector<32x128xf32>
    %c584 = arith.constant 584 : index
    %c0_92 = arith.constant 0 : index
    %239 = vector.load %arg0[%c584, %c0_92] : memref<592x128xf32, #tpu.memory_space<vmem>>, vector<1x128xf32>
    %240 = arith.truncf %235 : vector<8x32xf32> to vector<8x32xbf16>
    %241 = arith.truncf %237 : vector<32x128xf32> to vector<32x128xbf16>
    %cst_93 = arith.constant dense<0.000000e+00> : vector<8x128xf32>
    %242 = tpu.matmul %240, %241, %cst_93 {dimension_numbers = #tpu.dot_dimension_numbers<[1], [0], [0], [1], [0, 0, 1, 1], [], []>} : vector<8x32xbf16>, vector<32x128xbf16>, vector<8x128xf32> -> vector<8x128xf32>
    %243 = vector.broadcast %239 : vector<1x128xf32> to vector<8x128xf32>
    %244 = arith.addf %242, %243 : vector<8x128xf32>
    %245 = arith.truncf %236 : vector<8x32xf32> to vector<8x32xbf16>
    %246 = arith.truncf %237 : vector<32x128xf32> to vector<32x128xbf16>
    %cst_94 = arith.constant dense<0.000000e+00> : vector<8x128xf32>
    %247 = tpu.matmul %245, %246, %cst_94 {dimension_numbers = #tpu.dot_dimension_numbers<[1], [0], [0], [1], [0, 0, 1, 1], [], []>} : vector<8x32xbf16>, vector<32x128xbf16>, vector<8x128xf32> -> vector<8x128xf32>
    %248 = vector.broadcast %239 : vector<1x128xf32> to vector<8x128xf32>
    %249 = arith.addf %247, %248 : vector<8x128xf32>
    %250 = vector.extract_strided_slice %244 {offsets = [0, 0], sizes = [8, 32], strides = [1, 1]} : vector<8x128xf32> to vector<8x32xf32>
    %251 = arith.negf %250 : vector<8x32xf32>
    %252 = math.exp %251 : vector<8x32xf32>
    %cst_95 = arith.constant 1.000000e+00 : f32
    %253 = vector.broadcast %cst_95 : f32 to vector<8x32xf32>
    %254 = arith.addf %253, %252 : vector<8x32xf32>
    %255 = arith.divf %253, %254 : vector<8x32xf32>
    %256 = vector.extract_strided_slice %244 {offsets = [0, 64], sizes = [8, 32], strides = [1, 1]} : vector<8x128xf32> to vector<8x32xf32>
    %257 = math.tanh %256 : vector<8x32xf32>
    %258 = vector.extract_strided_slice %244 {offsets = [0, 96], sizes = [8, 32], strides = [1, 1]} : vector<8x128xf32> to vector<8x32xf32>
    %259 = arith.negf %258 : vector<8x32xf32>
    %260 = math.exp %259 : vector<8x32xf32>
    %cst_96 = arith.constant 1.000000e+00 : f32
    %261 = vector.broadcast %cst_96 : f32 to vector<8x32xf32>
    %262 = arith.addf %261, %260 : vector<8x32xf32>
    %263 = arith.divf %261, %262 : vector<8x32xf32>
    %264 = arith.mulf %255, %257 : vector<8x32xf32>
    %265 = math.tanh %264 : vector<8x32xf32>
    %266 = arith.mulf %263, %265 : vector<8x32xf32>
    %267 = arith.truncf %266 : vector<8x32xf32> to vector<8x32xbf16>
    %268 = arith.truncf %238 : vector<32x128xf32> to vector<32x128xbf16>
    %cst_97 = arith.constant dense<0.000000e+00> : vector<8x128xf32>
    %269 = tpu.matmul %267, %268, %cst_97 {dimension_numbers = #tpu.dot_dimension_numbers<[1], [0], [0], [1], [0, 0, 1, 1], [], []>} : vector<8x32xbf16>, vector<32x128xbf16>, vector<8x128xf32> -> vector<8x128xf32>
    %270 = arith.addf %249, %269 : vector<8x128xf32>
    %271 = vector.extract_strided_slice %270 {offsets = [0, 0], sizes = [8, 32], strides = [1, 1]} : vector<8x128xf32> to vector<8x32xf32>
    %272 = arith.negf %271 : vector<8x32xf32>
    %273 = math.exp %272 : vector<8x32xf32>
    %cst_98 = arith.constant 1.000000e+00 : f32
    %274 = vector.broadcast %cst_98 : f32 to vector<8x32xf32>
    %275 = arith.addf %274, %273 : vector<8x32xf32>
    %276 = arith.divf %274, %275 : vector<8x32xf32>
    %277 = vector.extract_strided_slice %270 {offsets = [0, 32], sizes = [8, 32], strides = [1, 1]} : vector<8x128xf32> to vector<8x32xf32>
    %278 = arith.negf %277 : vector<8x32xf32>
    %279 = math.exp %278 : vector<8x32xf32>
    %cst_99 = arith.constant 1.000000e+00 : f32
    %280 = vector.broadcast %cst_99 : f32 to vector<8x32xf32>
    %281 = arith.addf %280, %279 : vector<8x32xf32>
    %282 = arith.divf %280, %281 : vector<8x32xf32>
    %283 = vector.extract_strided_slice %270 {offsets = [0, 64], sizes = [8, 32], strides = [1, 1]} : vector<8x128xf32> to vector<8x32xf32>
    %284 = math.tanh %283 : vector<8x32xf32>
    %285 = vector.extract_strided_slice %270 {offsets = [0, 96], sizes = [8, 32], strides = [1, 1]} : vector<8x128xf32> to vector<8x32xf32>
    %286 = arith.negf %285 : vector<8x32xf32>
    %287 = math.exp %286 : vector<8x32xf32>
    %cst_100 = arith.constant 1.000000e+00 : f32
    %288 = vector.broadcast %cst_100 : f32 to vector<8x32xf32>
    %289 = arith.addf %288, %287 : vector<8x32xf32>
    %290 = arith.divf %288, %289 : vector<8x32xf32>
    %291 = arith.mulf %282, %264 : vector<8x32xf32>
    %292 = arith.mulf %276, %284 : vector<8x32xf32>
    %293 = arith.addf %291, %292 : vector<8x32xf32>
    %294 = math.tanh %293 : vector<8x32xf32>
    %295 = arith.mulf %290, %294 : vector<8x32xf32>
    %c0_101 = arith.constant 0 : index
    %c0_102 = arith.constant 0 : index
    %296 = vector.load %arg5[%c0_101, %c0_102] : memref<24x32xf32, #tpu.memory_space<vmem>>, vector<8x32xf32>
    tpu.vector_store %arg5[%c0_101, %c0_102], %295 {strides = array<i32>} : memref<24x32xf32, #tpu.memory_space<vmem>>, vector<8x32xf32>,
    %c0_103 = arith.constant 0 : index
    %c0_104 = arith.constant 0 : index
    %297 = vector.load %arg5[%c0_103, %c0_104] : memref<24x32xf32, #tpu.memory_space<vmem>>, vector<8x32xf32>
    %c0_105 = arith.constant 0 : index
    %c0_106 = arith.constant 0 : index
    %298 = vector.load %arg6[%c0_105, %c0_106] : memref<24x32xf32, #tpu.memory_space<vmem>>, vector<8x32xf32>
    %c0_107 = arith.constant 0 : index
    %c0_108 = arith.constant 0 : index
    %299 = vector.load %arg2[%c0_107, %c0_108] : memref<24x3xf32, #tpu.memory_space<vmem>>, vector<8x3xf32>
    %c272_109 = arith.constant 272 : index
    %c0_110 = arith.constant 0 : index
    %300 = vector.load %arg0[%c272_109, %c0_110] : memref<592x128xf32, #tpu.memory_space<vmem>>, vector<32x32xf32>
    %301 = arith.truncf %297 : vector<8x32xf32> to vector<8x32xbf16>
    %302 = arith.truncf %300 : vector<32x32xf32> to vector<32x32xbf16>
    %cst_111 = arith.constant dense<0.000000e+00> : vector<8x32xf32>
    %303 = tpu.matmul %301, %302, %cst_111 {dimension_numbers = #tpu.dot_dimension_numbers<[1], [0], [0], [1], [0, 0, 1, 1], [], []>} : vector<8x32xbf16>, vector<32x32xbf16>, vector<8x32xf32> -> vector<8x32xf32>
    %c304_112 = arith.constant 304 : index
    %c0_113 = arith.constant 0 : index
    %304 = vector.load %arg0[%c304_112, %c0_113] : memref<592x128xf32, #tpu.memory_space<vmem>>, vector<32x32xf32>
    %305 = arith.truncf %298 : vector<8x32xf32> to vector<8x32xbf16>
    %306 = arith.truncf %304 : vector<32x32xf32> to vector<32x32xbf16>
    %cst_114 = arith.constant dense<0.000000e+00> : vector<8x32xf32>
    %307 = tpu.matmul %305, %306, %cst_114 {dimension_numbers = #tpu.dot_dimension_numbers<[1], [0], [0], [1], [0, 0, 1, 1], [], []>} : vector<8x32xbf16>, vector<32x32xbf16>, vector<8x32xf32> -> vector<8x32xf32>
    %308 = arith.addf %303, %307 : vector<8x32xf32>
    %c344_115 = arith.constant 344 : index
    %c0_116 = arith.constant 0 : index
    %309 = vector.load %arg0[%c344_115, %c0_116] : memref<592x128xf32, #tpu.memory_space<vmem>>, vector<1x32xf32>
    %310 = vector.broadcast %309 : vector<1x32xf32> to vector<8x32xf32>
    %311 = arith.addf %308, %310 : vector<8x32xf32>
    %c336_117 = arith.constant 336 : index
    %c0_118 = arith.constant 0 : index
    %312 = vector.load %arg0[%c336_117, %c0_118] : memref<592x128xf32, #tpu.memory_space<vmem>>, vector<3x32xf32>
    %313 = vector.extract_strided_slice %299 {offsets = [0, 0], sizes = [8, 1], strides = [1, 1]} : vector<8x3xf32> to vector<8x1xf32>
    %314 = vector.extract_strided_slice %312 {offsets = [0, 0], sizes = [1, 32], strides = [1, 1]} : vector<3x32xf32> to vector<1x32xf32>
    %315 = vector.broadcast %313 : vector<8x1xf32> to vector<8x32xf32>
    %316 = vector.broadcast %314 : vector<1x32xf32> to vector<8x32xf32>
    %317 = arith.mulf %315, %316 : vector<8x32xf32>
    %318 = arith.addf %311, %317 : vector<8x32xf32>
    %319 = vector.extract_strided_slice %299 {offsets = [0, 1], sizes = [8, 1], strides = [1, 1]} : vector<8x3xf32> to vector<8x1xf32>
    %320 = vector.extract_strided_slice %312 {offsets = [1, 0], sizes = [1, 32], strides = [1, 1]} : vector<3x32xf32> to vector<1x32xf32>
    %321 = vector.broadcast %319 : vector<8x1xf32> to vector<8x32xf32>
    %322 = vector.broadcast %320 : vector<1x32xf32> to vector<8x32xf32>
    %323 = arith.mulf %321, %322 : vector<8x32xf32>
    %324 = arith.addf %318, %323 : vector<8x32xf32>
    %325 = vector.extract_strided_slice %299 {offsets = [0, 2], sizes = [8, 1], strides = [1, 1]} : vector<8x3xf32> to vector<8x1xf32>
    %326 = vector.extract_strided_slice %312 {offsets = [2, 0], sizes = [1, 32], strides = [1, 1]} : vector<3x32xf32> to vector<1x32xf32>
    %327 = vector.broadcast %325 : vector<8x1xf32> to vector<8x32xf32>
    %328 = vector.broadcast %326 : vector<1x32xf32> to vector<8x32xf32>
    %329 = arith.mulf %327, %328 : vector<8x32xf32>
    %330 = arith.addf %324, %329 : vector<8x32xf32>
    %cst_119 = arith.constant 0.000000e+00 : f32
    %331 = vector.broadcast %cst_119 : f32 to vector<8x32xf32>
    %332 = arith.minimumf %330, %331 : vector<8x32xf32>
    %333 = math.exp %332 : vector<8x32xf32>
    %cst_120 = arith.constant 1.000000e+00 : f32
    %334 = vector.broadcast %cst_120 : f32 to vector<8x32xf32>
    %335 = arith.subf %333, %334 : vector<8x32xf32>
    %cst_121 = arith.constant -1.000000e-03 : f32
    %336 = vector.broadcast %cst_121 : f32 to vector<8x32xf32>
    %337 = arith.cmpf ogt, %332, %336 : vector<8x32xf32>
    %cst_122 = arith.constant 5.000000e-01 : f32
    %338 = vector.broadcast %cst_122 : f32 to vector<8x32xf32>
    %339 = arith.mulf %338, %332 : vector<8x32xf32>
    %340 = arith.mulf %339, %332 : vector<8x32xf32>
    %341 = arith.addf %332, %340 : vector<8x32xf32>
    %342 = arith.select %337, %341, %335 : vector<8x32xi1>, vector<8x32xf32>
    %cst_123 = arith.constant 0.000000e+00 : f32
    %343 = vector.broadcast %cst_123 : f32 to vector<8x32xf32>
    %344 = arith.cmpf ogt, %330, %343 : vector<8x32xf32>
    %345 = arith.select %344, %330, %342 : vector<8x32xi1>, vector<8x32xf32>
    %c352_124 = arith.constant 352 : index
    %c0_125 = arith.constant 0 : index
    %346 = vector.load %arg0[%c352_124, %c0_125] : memref<592x128xf32, #tpu.memory_space<vmem>>, vector<32x32xf32>
    %347 = arith.truncf %345 : vector<8x32xf32> to vector<8x32xbf16>
    %348 = arith.truncf %346 : vector<32x32xf32> to vector<32x32xbf16>
    %cst_126 = arith.constant dense<0.000000e+00> : vector<8x32xf32>
    %349 = tpu.matmul %347, %348, %cst_126 {dimension_numbers = #tpu.dot_dimension_numbers<[1], [0], [0], [1], [0, 0, 1, 1], [], []>} : vector<8x32xbf16>, vector<32x32xbf16>, vector<8x32xf32> -> vector<8x32xf32>
    %c384_127 = arith.constant 384 : index
    %c0_128 = arith.constant 0 : index
    %350 = vector.load %arg0[%c384_127, %c0_128] : memref<592x128xf32, #tpu.memory_space<vmem>>, vector<1x32xf32>
    %351 = vector.broadcast %350 : vector<1x32xf32> to vector<8x32xf32>
    %352 = arith.addf %349, %351 : vector<8x32xf32>
    %cst_129 = arith.constant 0.000000e+00 : f32
    %353 = vector.broadcast %cst_129 : f32 to vector<8x32xf32>
    %354 = arith.minimumf %352, %353 : vector<8x32xf32>
    %355 = math.exp %354 : vector<8x32xf32>
    %cst_130 = arith.constant 1.000000e+00 : f32
    %356 = vector.broadcast %cst_130 : f32 to vector<8x32xf32>
    %357 = arith.subf %355, %356 : vector<8x32xf32>
    %cst_131 = arith.constant -1.000000e-03 : f32
    %358 = vector.broadcast %cst_131 : f32 to vector<8x32xf32>
    %359 = arith.cmpf ogt, %354, %358 : vector<8x32xf32>
    %cst_132 = arith.constant 5.000000e-01 : f32
    %360 = vector.broadcast %cst_132 : f32 to vector<8x32xf32>
    %361 = arith.mulf %360, %354 : vector<8x32xf32>
    %362 = arith.mulf %361, %354 : vector<8x32xf32>
    %363 = arith.addf %354, %362 : vector<8x32xf32>
    %364 = arith.select %359, %363, %357 : vector<8x32xi1>, vector<8x32xf32>
    %cst_133 = arith.constant 0.000000e+00 : f32
    %365 = vector.broadcast %cst_133 : f32 to vector<8x32xf32>
    %366 = arith.cmpf ogt, %352, %365 : vector<8x32xf32>
    %367 = arith.select %366, %352, %364 : vector<8x32xi1>, vector<8x32xf32>
    %c0_134 = arith.constant 0 : index
    %c0_135 = arith.constant 0 : index
    %368 = vector.load %arg4[%c0_134, %c0_135] : memref<24x32xf32, #tpu.memory_space<vmem>>, vector<8x32xf32>
    tpu.vector_store %arg4[%c0_134, %c0_135], %367 {strides = array<i32>} : memref<24x32xf32, #tpu.memory_space<vmem>>, vector<8x32xf32>,
    %c0_136 = arith.constant 0 : index
    %c0_137 = arith.constant 0 : index
    %369 = vector.load %arg4[%c0_136, %c0_137] : memref<24x32xf32, #tpu.memory_space<vmem>>, vector<8x32xf32>
    %c192 = arith.constant 192 : index
    %c0_138 = arith.constant 0 : index
    %370 = vector.load %arg0[%c192, %c0_138] : memref<592x128xf32, #tpu.memory_space<vmem>>, vector<32x32xf32>
    %371 = arith.truncf %369 : vector<8x32xf32> to vector<8x32xbf16>
    %372 = arith.truncf %370 : vector<32x32xf32> to vector<32x32xbf16>
    %cst_139 = arith.constant dense<0.000000e+00> : vector<8x32xf32>
    %373 = tpu.matmul %371, %372, %cst_139 {dimension_numbers = #tpu.dot_dimension_numbers<[1], [0], [0], [1], [0, 0, 1, 1], [], []>} : vector<8x32xbf16>, vector<32x32xbf16>, vector<8x32xf32> -> vector<8x32xf32>
    %c224 = arith.constant 224 : index
    %c0_140 = arith.constant 0 : index
    %374 = vector.load %arg0[%c224, %c0_140] : memref<592x128xf32, #tpu.memory_space<vmem>>, vector<1x32xf32>
    %375 = vector.broadcast %374 : vector<1x32xf32> to vector<8x32xf32>
    %376 = arith.addf %373, %375 : vector<8x32xf32>
    %cst_141 = arith.constant 0.000000e+00 : f32
    %377 = vector.broadcast %cst_141 : f32 to vector<8x32xf32>
    %378 = arith.minimumf %376, %377 : vector<8x32xf32>
    %379 = math.exp %378 : vector<8x32xf32>
    %cst_142 = arith.constant 1.000000e+00 : f32
    %380 = vector.broadcast %cst_142 : f32 to vector<8x32xf32>
    %381 = arith.subf %379, %380 : vector<8x32xf32>
    %cst_143 = arith.constant -1.000000e-03 : f32
    %382 = vector.broadcast %cst_143 : f32 to vector<8x32xf32>
    %383 = arith.cmpf ogt, %378, %382 : vector<8x32xf32>
    %cst_144 = arith.constant 5.000000e-01 : f32
    %384 = vector.broadcast %cst_144 : f32 to vector<8x32xf32>
    %385 = arith.mulf %384, %378 : vector<8x32xf32>
    %386 = arith.mulf %385, %378 : vector<8x32xf32>
    %387 = arith.addf %378, %386 : vector<8x32xf32>
    %388 = arith.select %383, %387, %381 : vector<8x32xi1>, vector<8x32xf32>
    %cst_145 = arith.constant 0.000000e+00 : f32
    %389 = vector.broadcast %cst_145 : f32 to vector<8x32xf32>
    %390 = arith.cmpf ogt, %376, %389 : vector<8x32xf32>
    %391 = arith.select %390, %376, %388 : vector<8x32xi1>, vector<8x32xf32>
    %c232 = arith.constant 232 : index
    %c0_146 = arith.constant 0 : index
    %392 = vector.load %arg0[%c232, %c0_146] : memref<592x128xf32, #tpu.memory_space<vmem>>, vector<32x32xf32>
    %393 = arith.truncf %391 : vector<8x32xf32> to vector<8x32xbf16>
    %394 = arith.truncf %392 : vector<32x32xf32> to vector<32x32xbf16>
    %cst_147 = arith.constant dense<0.000000e+00> : vector<8x32xf32>
    %395 = tpu.matmul %393, %394, %cst_147 {dimension_numbers = #tpu.dot_dimension_numbers<[1], [0], [0], [1], [0, 0, 1, 1], [], []>} : vector<8x32xbf16>, vector<32x32xbf16>, vector<8x32xf32> -> vector<8x32xf32>
    %c264 = arith.constant 264 : index
    %c0_148 = arith.constant 0 : index
    %396 = vector.load %arg0[%c264, %c0_148] : memref<592x128xf32, #tpu.memory_space<vmem>>, vector<1x32xf32>
    %397 = vector.broadcast %396 : vector<1x32xf32> to vector<8x32xf32>
    %398 = arith.addf %395, %397 : vector<8x32xf32>
    %cst_149 = arith.constant 0.000000e+00 : f32
    %399 = vector.broadcast %cst_149 : f32 to vector<8x32xf32>
    %400 = arith.minimumf %398, %399 : vector<8x32xf32>
    %401 = math.exp %400 : vector<8x32xf32>
    %cst_150 = arith.constant 1.000000e+00 : f32
    %402 = vector.broadcast %cst_150 : f32 to vector<8x32xf32>
    %403 = arith.subf %401, %402 : vector<8x32xf32>
    %cst_151 = arith.constant -1.000000e-03 : f32
    %404 = vector.broadcast %cst_151 : f32 to vector<8x32xf32>
    %405 = arith.cmpf ogt, %400, %404 : vector<8x32xf32>
    %cst_152 = arith.constant 5.000000e-01 : f32
    %406 = vector.broadcast %cst_152 : f32 to vector<8x32xf32>
    %407 = arith.mulf %406, %400 : vector<8x32xf32>
    %408 = arith.mulf %407, %400 : vector<8x32xf32>
    %409 = arith.addf %400, %408 : vector<8x32xf32>
    %410 = arith.select %405, %409, %403 : vector<8x32xi1>, vector<8x32xf32>
    %cst_153 = arith.constant 0.000000e+00 : f32
    %411 = vector.broadcast %cst_153 : f32 to vector<8x32xf32>
    %412 = arith.cmpf ogt, %398, %411 : vector<8x32xf32>
    %413 = arith.select %412, %398, %410 : vector<8x32xi1>, vector<8x32xf32>
    %c392 = arith.constant 392 : index
    %c0_154 = arith.constant 0 : index
    %414 = vector.load %arg0[%c392, %c0_154] : memref<592x128xf32, #tpu.memory_space<vmem>>, vector<32x128xf32>
    %415 = arith.truncf %413 : vector<8x32xf32> to vector<8x32xbf16>
    %416 = arith.truncf %414 : vector<32x128xf32> to vector<32x128xbf16>
    %cst_155 = arith.constant dense<0.000000e+00> : vector<8x128xf32>
    %417 = tpu.matmul %415, %416, %cst_155 {dimension_numbers = #tpu.dot_dimension_numbers<[1], [0], [0], [1], [0, 0, 1, 1], [], []>} : vector<8x32xbf16>, vector<32x128xbf16>, vector<8x128xf32> -> vector<8x128xf32>
    %c424 = arith.constant 424 : index
    %c0_156 = arith.constant 0 : index
    %418 = vector.load %arg0[%c424, %c0_156] : memref<592x128xf32, #tpu.memory_space<vmem>>, vector<1x128xf32>
    %419 = vector.broadcast %418 : vector<1x128xf32> to vector<8x128xf32>
    %420 = arith.addf %417, %419 : vector<8x128xf32>
    %c0_157 = arith.constant 0 : index
    %c0_158 = arith.constant 0 : index
    %421 = vector.load %arg3[%c0_157, %c0_158] : memref<8x128xf32, #tpu.memory_space<vmem>>, vector<8x128xf32>
    tpu.vector_store %arg3[%c0_157, %c0_158], %420 {strides = array<i32>} : memref<8x128xf32, #tpu.memory_space<vmem>>, vector<8x128xf32>,
    return
  }
}

</mosaic_0001>

<llo_original>
// kernel: tpu_custom_call.1
$region0: #{tpu_custom_call.1}
  #allocation0 [shape = 'u32[]', space=smem, size = 0x4, offset = 0x4, fixed_abs, tag = 'smem constant byte address 0x4 - core index']
  #allocation1 [shape = 'u32[144,128]{1,0:T(1,128)}', space=vmem, size = 0x12000, scoped, tag = 'internal scratch']
  #allocation2 [shape = 'f32[24,32]{1,0:T(8,128)}', space=vmem, size = 0x3000, scoped, tag = 'scratch operand']
  #allocation3 [shape = 'f32[24,32]{1,0:T(8,128)}', space=vmem, size = 0x3000, scoped, tag = 'scratch operand']
  #allocation4 [shape = 'f32[24,32]{1,0:T(8,128)}', space=vmem, size = 0x3000, scoped, tag = 'scratch operand']
  #allocation5 [shape = 'f32[32,32]{1,0:T(8,128)}', space=vmem, size = 0x4000, scoped, tag = 'scratch operand']
  %s0 = inlined_call_operand.hbm [shape: f32[592,128], index: 0, kind: input, shape index: {}]
  %s1 = inlined_call_operand.vmem [shape: f32[32,16], index: 1, kind: input, shape index: {}]
  %s2 = inlined_call_operand.vmem [shape: f32[24,3], index: 2, kind: input, shape index: {}]
  %s3 = inlined_call_operand.hbm [shape: f32[8,128], index: 3, kind: output, shape index: {}]
  %s4 = sld [smem:[#allocation0]]
  $region26: #{tpu_custom_call.1} parent=0
    _
  %s6 = ssub.s32 1, %s4
  %s7 = scalar_select 0, %s6, %s4
  $region1: #{tpu_custom_call.1} parent=0
    #allocation6 [shape = 'u8[303104]{0}', space=vmem, size = 0x4a000, scoped, tag = 'input window, operand 0, single buffered']
    #allocation7 [shape = 's32[1]{0}', space=sflag, size = 0x4, scoped, tag = 'scoped memory for tpu_custom_call.1']
    #allocation8 [shape = 's32[1]{0}', space=sflag, size = 0x4, scoped, tag = 'scoped memory for tpu_custom_call.1']
    #allocation9 [shape = 'u8[4096]{0}', space=vmem, size = 0x1000, scoped, tag = 'output window, operand 0, single buffered']
    %8 = vsyncpa [#allocation7], 0
    %9 = vsyncpa [#allocation8], 0
    // Predicated region
    $region2: #{tpu_custom_call.1} parent=1 // pred_check
      _
    $region3: #{tpu_custom_call.1} parent=1 // pred_check_branch
      %11 = sbr.rel (0) target = $region5
    $region4: #{tpu_custom_call.1} parent=1 // pred_region
      %s13 = ssub.s32 9472, 9472
      %14 = vsyncadd [#allocation7], %s13
      %s15 = sshll.u32 [#allocation6], 4
      %s16 = int_to_ptr.vmem [resolvable:$true] %s15
      %21 = dma.hbm_to_vmem [thread:$0]  %s0, 9472, %s16, [#allocation7], 128, 128, 8
    $region5: #{tpu_custom_call.1} parent=1 // pred_fallthru
      _
    // Predicated region
    $region6: #{tpu_custom_call.1} parent=1 // pred_check
      _
    $region7: #{tpu_custom_call.1} parent=1 // pred_check_branch
      %23 = sbr.rel (0) target = $region9
    $region8: #{tpu_custom_call.1} parent=1 // pred_region
      _
    $region9: #{tpu_custom_call.1} parent=1 // pred_fallthru
      _
    // Predicated region
    $region10: #{tpu_custom_call.1} parent=1 // pred_check
      _
    $region11: #{tpu_custom_call.1} parent=1 // pred_check_branch
      %25 = sbr.rel (0) target = $region13
    $region12: #{tpu_custom_call.1} parent=1 // pred_region
      _
    $region13: #{tpu_custom_call.1} parent=1 // pred_fallthru
      _
    // Predicated region
    $region14: #{tpu_custom_call.1} parent=1 // pred_check
      _
    $region15: #{tpu_custom_call.1} parent=1 // pred_check_branch
      %27 = sbr.rel (0) target = $region17
    $region16: #{tpu_custom_call.1} parent=1 // pred_region
      %28 = dma.done [#allocation7], 9472
    $region17: #{tpu_custom_call.1} parent=1 // pred_fallthru
      _
    %v30 = vld [vmem:[%s1] sm:$0xff]
    %v31 = vld [vmem:[%s1 + $0x8] sm:$0xff]
    %v32 = vld [vmem:[%s1 + $0x10] sm:$0xff]
    %v33 = vld [vmem:[%s1 + $0x18] sm:$0xff]
    %v34 = vld [vmem:[#allocation6] sm:$0xff]
    %v35 = vld [vmem:[#allocation6 + $0x8] sm:$0xff]
    %v36 = vpack.c.bf16 %v31, %v30
    %v37 = vpack.c.bf16 %v33, %v32
    %v38 = vpack.c.bf16 %v35, %v34
    %v39 = vld [vmem:[#allocation6 + $0x10] sm:$0x1]
    %v40 = vlaneseq
    %v41 = vshrl.u32 %v40, 7
    %v42 = vsub.s32 0, %v41
    %v43 = vrot.slane %v39, %v42
    %vm44 = vcmask 130048
    %v46 = vsel %vm44, %v36, 0
    %v49 = vsel %vm44, %v37, 0
    %51 = vmatprep.subr.bf16.mxu0 0
    %52 = vmatpush1.bf16.msra.mxu0 %v38
    %53 = vmatprep.subr.bf16.mxu0 0
    %54 = vmatpush1.bf16.msra.mxu0 0
    %55 = vmatprep.subr.bf16.mxu0 0
    %56 = vmatpush1.bf16.msra.mxu0 0
    %57 = vmatprep.subr.bf16.mxu0 0
    %58 = vmatpush1.bf16.msra.mxu0 0
    %59 = vmatprep.subr.bf16.mxu0 0
    %60 = vmatpush1.bf16.msra.mxu0 0
    %61 = vmatprep.subr.bf16.mxu0 0
    %62 = vmatpush1.bf16.msra.mxu0 0
    %63 = vmatprep.subr.bf16.mxu0 0
    %64 = vmatpush1.bf16.msra.mxu0 0
    %65 = vmatprep.subr.bf16.mxu0 0
    %66 = vmatpush1.bf16.msra.mxu0 0
    %67 = vmatprep.subr.bf16.mxu0 0
    %68 = vmatpush1.bf16.msra.mxu0 0
    %69 = vmatprep.subr.bf16.mxu0 0
    %70 = vmatpush1.bf16.msra.mxu0 0
    %71 = vmatprep.subr.bf16.mxu0 0
    %72 = vmatpush1.bf16.msra.mxu0 0
    %73 = vmatprep.subr.bf16.mxu0 0
    %74 = vmatpush1.bf16.msra.mxu0 0
    %75 = vmatprep.subr.bf16.mxu0 0
    %76 = vmatpush1.bf16.msra.mxu0 0
    %77 = vmatprep.subr.bf16.mxu0 0
    %78 = vmatpush1.bf16.msra.mxu0 0
    %79 = vmatprep.subr.bf16.mxu0 0
    %80 = vmatpush1.bf16.msra.mxu0 0
    %81 = vmatprep.subr.bf16.mxu0 0
    %82 = vmatpush1.bf16.msra.mxu0 0
    %83 = vmatprep.mubr.bf16.mxu0 0
    %84 = vmatmul.mubr.bf16.gmra.mrb[0].mxu0 %v46
    %v85 = vpop.f32.mrb[0].mxu0
    %v86 = vadd.f32 %v43, %v85
    %v87 = vpop.f32.mrb[0].mxu0
    %v88 = vpop.f32.mrb[0].mxu0
    %v89 = vadd.f32 %v43, %v88
    %v90 = vpop.f32.mrb[0].mxu0
    %91 = vmatprep.mubr.bf16.mxu0 0
    %92 = vmatmul.mubr.bf16.gmra.mrb[0].mxu0 %v49
    %v93 = vpop.f32.mrb[0].mxu0
    %v94 = vadd.f32 %v43, %v93
    %v95 = vpop.f32.mrb[0].mxu0
    %v96 = vpop.f32.mrb[0].mxu0
    %v97 = vadd.f32 %v43, %v96
    %v98 = vpop.f32.mrb[0].mxu0
    %99 = vdwg.mxu0
    %v100 = vmin.f32 %v86, 0.0
    %v101 = vmin.f32 %v89, 0.0
    %v102 = vmin.f32 %v94, 0.0
    %v103 = vmin.f32 %v97, 0.0
    %v104 = vmul.f32 %v100, 1.442695
    %v105 = vpow.pop %v104
    %v106 = vmul.f32 %v101, 1.442695
    %v107 = vpow.pop %v106
    %v108 = vmul.f32 %v102, 1.442695
    %v109 = vpow.pop %v108
    %v110 = vmul.f32 %v103, 1.442695
    %v111 = vpow.pop %v110
    %v112 = vsub.f32 %v105, 1.0
    %v113 = vsub.f32 %v107, 1.0
    %v114 = vsub.f32 %v109, 1.0
    %v115 = vsub.f32 %v111, 1.0
    %vm116 = vcmp.gt.f32.partialorder %v100, -0.001
    %vm117 = vcmp.gt.f32.partialorder %v101, -0.001
    %vm118 = vcmp.gt.f32.partialorder %v102, -0.001
    %vm119 = vcmp.gt.f32.partialorder %v103, -0.001
    %v120 = vmul.f32 %v100, 0.5
    %v121 = vmul.f32 %v101, 0.5
    %v122 = vmul.f32 %v102, 0.5
    %v123 = vmul.f32 %v103, 0.5
    %v124 = vmul.f32 %v120, %v100
    %v125 = vmul.f32 %v121, %v101
    %v126 = vmul.f32 %v122, %v102
    %v127 = vmul.f32 %v123, %v103
    %v128 = vadd.f32 %v100, %v124
    %v129 = vadd.f32 %v101, %v125
    %v130 = vadd.f32 %v102, %v126
    %v131 = vadd.f32 %v103, %v127
    %v132 = vsel %vm116, %v128, %v112
    %v133 = vsel %vm117, %v129, %v113
    %v134 = vsel %vm118, %v130, %v114
    %v135 = vsel %vm119, %v131, %v115
    %vm136 = vcmp.gt.f32.partialorder %v86, 0.0
    %vm137 = vcmp.gt.f32.partialorder %v89, 0.0
    %vm138 = vcmp.gt.f32.partialorder %v94, 0.0
    %vm139 = vcmp.gt.f32.partialorder %v97, 0.0
    %v140 = vsel %vm136, %v86, %v132
    %v141 = vsel %vm137, %v89, %v133
    %v142 = vsel %vm138, %v94, %v134
    %v143 = vsel %vm139, %v97, %v135
    %v144 = vld [vmem:[#allocation6 + $0x18] sm:$0xff]
    %v145 = vld [vmem:[#allocation6 + $0x20] sm:$0xff]
    %v146 = vld [vmem:[#allocation6 + $0x28] sm:$0xff]
    %v147 = vld [vmem:[#allocation6 + $0x30] sm:$0xff]
    %v148 = vld [vmem:[#allocation6 + $0x38] sm:$0xff]
    %v149 = vld [vmem:[#allocation6 + $0x40] sm:$0xff]
    %v150 = vld [vmem:[#allocation6 + $0x48] sm:$0xff]
    %v151 = vld [vmem:[#allocation6 + $0x50] sm:$0xff]
    %v152 = vpack.c.bf16 %v141, %v140
    %v153 = vpack.c.bf16 %v143, %v142
    %v154 = vpack.c.bf16 %v145, %v144
    %v155 = vpack.c.bf16 %v147, %v146
    %v156 = vpack.c.bf16 %v149, %v148
    %v157 = vpack.c.bf16 %v151, %v150
    %v158 = vld [vmem:[#allocation6 + $0x58] sm:$0x1]
    %v159 = vlaneseq
    %v160 = vshrl.u32 %v159, 7
    %v161 = vsub.s32 0, %v160
    %v162 = vrot.slane %v158, %v161
    %vm163 = vcmask 523264
    %v165 = vsel %vm163, %v152, 0
    %v168 = vsel %vm163, %v153, 0
    %170 = vmatprep.subr.bf16.mxu0 0
    %171 = vmatpush1.bf16.msra.mxu0 %v154
    %172 = vmatprep.subr.bf16.mxu0 0
    %173 = vmatpush1.bf16.msra.mxu0 %v155
    %174 = vmatprep.subr.bf16.mxu0 0
    %175 = vmatpush1.bf16.msra.mxu0 %v156
    %176 = vmatprep.subr.bf16.mxu0 0
    %177 = vmatpush1.bf16.msra.mxu0 %v157
    %178 = vmatprep.subr.bf16.mxu0 0
    %179 = vmatpush1.bf16.msra.mxu0 0
    %180 = vmatprep.subr.bf16.mxu0 0
    %181 = vmatpush1.bf16.msra.mxu0 0
    %182 = vmatprep.subr.bf16.mxu0 0
    %183 = vmatpush1.bf16.msra.mxu0 0
    %184 = vmatprep.subr.bf16.mxu0 0
    %185 = vmatpush1.bf16.msra.mxu0 0
    %186 = vmatprep.subr.bf16.mxu0 0
    %187 = vmatpush1.bf16.msra.mxu0 0
    %188 = vmatprep.subr.bf16.mxu0 0
    %189 = vmatpush1.bf16.msra.mxu0 0
    %190 = vmatprep.subr.bf16.mxu0 0
    %191 = vmatpush1.bf16.msra.mxu0 0
    %192 = vmatprep.subr.bf16.mxu0 0
    %193 = vmatpush1.bf16.msra.mxu0 0
    %194 = vmatprep.subr.bf16.mxu0 0
    %195 = vmatpush1.bf16.msra.mxu0 0
    %196 = vmatprep.subr.bf16.mxu0 0
    %197 = vmatpush1.bf16.msra.mxu0 0
    %198 = vmatprep.subr.bf16.mxu0 0
    %199 = vmatpush1.bf16.msra.mxu0 0
    %200 = vmatprep.subr.bf16.mxu0 0
    %201 = vmatpush1.bf16.msra.mxu0 0
    %202 = vmatprep.mubr.bf16.mxu0 0
    %203 = vmatmul.mubr.bf16.gmra.mrb[0].mxu0 %v165
    %v204 = vpop.f32.mrb[0].mxu0
    %v205 = vadd.f32 %v162, %v204
    %v206 = vpop.f32.mrb[0].mxu0
    %v207 = vpop.f32.mrb[0].mxu0
    %v208 = vadd.f32 %v162, %v207
    %v209 = vpop.f32.mrb[0].mxu0
    %210 = vmatprep.mubr.bf16.mxu0 0
    %211 = vmatmul.mubr.bf16.gmra.mrb[0].mxu0 %v168
    %v212 = vpop.f32.mrb[0].mxu0
    %v213 = vadd.f32 %v162, %v212
    %v214 = vpop.f32.mrb[0].mxu0
    %v215 = vpop.f32.mrb[0].mxu0
    %v216 = vadd.f32 %v162, %v215
    %v217 = vpop.f32.mrb[0].mxu0
    %218 = vdwg.mxu0
    %v219 = vmin.f32 %v205, 0.0
    %v220 = vmin.f32 %v208, 0.0
    %v221 = vmin.f32 %v213, 0.0
    %v222 = vmin.f32 %v216, 0.0
    %v223 = vmul.f32 %v219, 1.442695
    %v224 = vpow.pop %v223
    %v225 = vmul.f32 %v220, 1.442695
    %v226 = vpow.pop %v225
    %v227 = vmul.f32 %v221, 1.442695
    %v228 = vpow.pop %v227
    %v229 = vmul.f32 %v222, 1.442695
    %v230 = vpow.pop %v229
    %v231 = vsub.f32 %v224, 1.0
    %v232 = vsub.f32 %v226, 1.0
    %v233 = vsub.f32 %v228, 1.0
    %v234 = vsub.f32 %v230, 1.0
    %vm235 = vcmp.gt.f32.partialorder %v219, -0.001
    %vm236 = vcmp.gt.f32.partialorder %v220, -0.001
    %vm237 = vcmp.gt.f32.partialorder %v221, -0.001
    %vm238 = vcmp.gt.f32.partialorder %v222, -0.001
    %v239 = vmul.f32 %v219, 0.5
    %v240 = vmul.f32 %v220, 0.5
    %v241 = vmul.f32 %v221, 0.5
    %v242 = vmul.f32 %v222, 0.5
    %v243 = vmul.f32 %v239, %v219
    %v244 = vmul.f32 %v240, %v220
    %v245 = vmul.f32 %v241, %v221
    %v246 = vmul.f32 %v242, %v222
    %v247 = vadd.f32 %v219, %v243
    %v248 = vadd.f32 %v220, %v244
    %v249 = vadd.f32 %v221, %v245
    %v250 = vadd.f32 %v222, %v246
    %v251 = vsel %vm235, %v247, %v231
    %v252 = vsel %vm236, %v248, %v232
    %v253 = vsel %vm237, %v249, %v233
    %v254 = vsel %vm238, %v250, %v234
    %vm255 = vcmp.gt.f32.partialorder %v205, 0.0
    %vm256 = vcmp.gt.f32.partialorder %v208, 0.0
    %vm257 = vcmp.gt.f32.partialorder %v213, 0.0
    %vm258 = vcmp.gt.f32.partialorder %v216, 0.0
    %v259 = vsel %vm255, %v205, %v251
    %v260 = vsel %vm256, %v208, %v252
    %v261 = vsel %vm257, %v213, %v253
    %v262 = vsel %vm258, %v216, %v254
    %v263 = vld [vmem:[#allocation6 + $0x60] sm:$0xff]
    %v264 = vld [vmem:[#allocation6 + $0x68] sm:$0xff]
    %v265 = vld [vmem:[#allocation6 + $0x70] sm:$0xff]
    %v266 = vld [vmem:[#allocation6 + $0x78] sm:$0xff]
    %v267 = vld [vmem:[#allocation6 + $0x80] sm:$0xff]
    %v268 = vld [vmem:[#allocation6 + $0x88] sm:$0xff]
    %v269 = vpack.c.bf16 %v260, %v259
    %v270 = vpack.c.bf16 %v262, %v261
    %v271 = vpack.c.bf16 %v264, %v263
    %v272 = vpack.c.bf16 %v266, %v265
    %v273 = vpack.c.bf16 %v268, %v267
    %v274 = vld [vmem:[#allocation6 + $0x90] sm:$0x1]
    %v275 = vlaneseq
    %v276 = vshrl.u32 %v275, 7
    %v277 = vsub.s32 0, %v276
    %v278 = vrot.slane %v274, %v277
    %vm279 = vcmask 392192
    %v281 = vsel %vm279, %v269, 0
    %v284 = vsel %vm279, %v270, 0
    %286 = vmatprep.subr.bf16.mxu0 0
    %287 = vmatpush1.bf16.msra.mxu0 %v271
    %288 = vmatprep.subr.bf16.mxu0 0
    %289 = vmatpush1.bf16.msra.mxu0 %v272
    %290 = vmatprep.subr.bf16.mxu0 0
    %291 = vmatpush1.bf16.msra.mxu0 %v273
    %292 = vmatprep.subr.bf16.mxu0 0
    %293 = vmatpush1.bf16.msra.mxu0 0
    %294 = vmatprep.subr.bf16.mxu0 0
    %295 = vmatpush1.bf16.msra.mxu0 0
    %296 = vmatprep.subr.bf16.mxu0 0
    %297 = vmatpush1.bf16.msra.mxu0 0
    %298 = vmatprep.subr.bf16.mxu0 0
    %299 = vmatpush1.bf16.msra.mxu0 0
    %300 = vmatprep.subr.bf16.mxu0 0
    %301 = vmatpush1.bf16.msra.mxu0 0
    %302 = vmatprep.subr.bf16.mxu0 0
    %303 = vmatpush1.bf16.msra.mxu0 0
    %304 = vmatprep.subr.bf16.mxu0 0
    %305 = vmatpush1.bf16.msra.mxu0 0
    %306 = vmatprep.subr.bf16.mxu0 0
    %307 = vmatpush1.bf16.msra.mxu0 0
    %308 = vmatprep.subr.bf16.mxu0 0
    %309 = vmatpush1.bf16.msra.mxu0 0
    %310 = vmatprep.subr.bf16.mxu0 0
    %311 = vmatpush1.bf16.msra.mxu0 0
    %312 = vmatprep.subr.bf16.mxu0 0
    %313 = vmatpush1.bf16.msra.mxu0 0
    %314 = vmatprep.subr.bf16.mxu0 0
    %315 = vmatpush1.bf16.msra.mxu0 0
    %316 = vmatprep.subr.bf16.mxu0 0
    %317 = vmatpush1.bf16.msra.mxu0 0
    %318 = vmatprep.mubr.bf16.mxu0 0
    %319 = vmatmul.mubr.bf16.gmra.mrb[0].mxu0 %v281
    %v320 = vpop.f32.mrb[0].mxu0
    %v321 = vadd.f32 %v278, %v320
    %v322 = vpop.f32.mrb[0].mxu0
    %v323 = vpop.f32.mrb[0].mxu0
    %v324 = vadd.f32 %v278, %v323
    %v325 = vpop.f32.mrb[0].mxu0
    %326 = vmatprep.mubr.bf16.mxu0 0
    %327 = vmatmul.mubr.bf16.gmra.mrb[0].mxu0 %v284
    %v328 = vpop.f32.mrb[0].mxu0
    %v329 = vadd.f32 %v278, %v328
    %v330 = vpop.f32.mrb[0].mxu0
    %v331 = vpop.f32.mrb[0].mxu0
    %v332 = vadd.f32 %v278, %v331
    %v333 = vpop.f32.mrb[0].mxu0
    %334 = vdwg.mxu0
    %v335 = vmin.f32 %v321, 0.0
    %v336 = vmin.f32 %v324, 0.0
    %v337 = vmin.f32 %v329, 0.0
    %v338 = vmin.f32 %v332, 0.0
    %v339 = vmul.f32 %v335, 1.442695
    %v340 = vpow.pop %v339
    %v341 = vmul.f32 %v336, 1.442695
    %v342 = vpow.pop %v341
    %v343 = vmul.f32 %v337, 1.442695
    %v344 = vpow.pop %v343
    %v345 = vmul.f32 %v338, 1.442695
    %v346 = vpow.pop %v345
    %v347 = vsub.f32 %v340, 1.0
    %v348 = vsub.f32 %v342, 1.0
    %v349 = vsub.f32 %v344, 1.0
    %v350 = vsub.f32 %v346, 1.0
    %vm351 = vcmp.gt.f32.partialorder %v335, -0.001
    %vm352 = vcmp.gt.f32.partialorder %v336, -0.001
    %vm353 = vcmp.gt.f32.partialorder %v337, -0.001
    %vm354 = vcmp.gt.f32.partialorder %v338, -0.001
    %v355 = vmul.f32 %v335, 0.5
    %v356 = vmul.f32 %v336, 0.5
    %v357 = vmul.f32 %v337, 0.5
    %v358 = vmul.f32 %v338, 0.5
    %v359 = vmul.f32 %v355, %v335
    %v360 = vmul.f32 %v356, %v336
    %v361 = vmul.f32 %v357, %v337
    %v362 = vmul.f32 %v358, %v338
    %v363 = vadd.f32 %v335, %v359
    %v364 = vadd.f32 %v336, %v360
    %v365 = vadd.f32 %v337, %v361
    %v366 = vadd.f32 %v338, %v362
    %v367 = vsel %vm351, %v363, %v347
    %v368 = vsel %vm352, %v364, %v348
    %v369 = vsel %vm353, %v365, %v349
    %v370 = vsel %vm354, %v366, %v350
    %vm371 = vcmp.gt.f32.partialorder %v321, 0.0
    %vm372 = vcmp.gt.f32.partialorder %v324, 0.0
    %vm373 = vcmp.gt.f32.partialorder %v329, 0.0
    %vm374 = vcmp.gt.f32.partialorder %v332, 0.0
    %v375 = vsel %vm371, %v321, %v367
    %v376 = vsel %vm372, %v324, %v368
    %v377 = vsel %vm373, %v329, %v369
    %v378 = vsel %vm374, %v332, %v370
    %v379 = vld [vmem:[#allocation6 + $0x98] sm:$0xff]
    %v380 = vld [vmem:[#allocation6 + $0xa0] sm:$0xff]
    %v381 = vld [vmem:[#allocation6 + $0xa8] sm:$0xff]
    %v382 = vld [vmem:[#allocation6 + $0xb0] sm:$0xff]
    %v383 = vpack.c.bf16 %v376, %v375
    %v384 = vpack.c.bf16 %v378, %v377
    %v385 = vpack.c.bf16 %v380, %v379
    %v386 = vpack.c.bf16 %v382, %v381
    %v387 = vld [vmem:[#allocation6 + $0xb8] sm:$0x1]
    %v388 = vlaneseq
    %v389 = vshrl.u32 %v388, 7
    %v390 = vsub.s32 0, %v389
    %v391 = vrot.slane %v387, %v390
    %vm392 = vcmask 261120
    %v394 = vsel %vm392, %v383, 0
    %v397 = vsel %vm392, %v384, 0
    %399 = vmatprep.subr.bf16.mxu0 0
    %400 = vmatpush1.bf16.msra.mxu0 %v385
    %401 = vmatprep.subr.bf16.mxu0 0
    %402 = vmatpush1.bf16.msra.mxu0 %v386
    %403 = vmatprep.subr.bf16.mxu0 0
    %404 = vmatpush1.bf16.msra.mxu0 0
    %405 = vmatprep.subr.bf16.mxu0 0
    %406 = vmatpush1.bf16.msra.mxu0 0
    %407 = vmatprep.subr.bf16.mxu0 0
    %408 = vmatpush1.bf16.msra.mxu0 0
    %409 = vmatprep.subr.bf16.mxu0 0
    %410 = vmatpush1.bf16.msra.mxu0 0
    %411 = vmatprep.subr.bf16.mxu0 0
    %412 = vmatpush1.bf16.msra.mxu0 0
    %413 = vmatprep.subr.bf16.mxu0 0
    %414 = vmatpush1.bf16.msra.mxu0 0
    %415 = vmatprep.subr.bf16.mxu0 0
    %416 = vmatpush1.bf16.msra.mxu0 0
    %417 = vmatprep.subr.bf16.mxu0 0
    %418 = vmatpush1.bf16.msra.mxu0 0
    %419 = vmatprep.subr.bf16.mxu0 0
    %420 = vmatpush1.bf16.msra.mxu0 0
    %421 = vmatprep.subr.bf16.mxu0 0
    %422 = vmatpush1.bf16.msra.mxu0 0
    %423 = vmatprep.subr.bf16.mxu0 0
    %424 = vmatpush1.bf16.msra.mxu0 0
    %425 = vmatprep.subr.bf16.mxu0 0
    %426 = vmatpush1.bf16.msra.mxu0 0
    %427 = vmatprep.subr.bf16.mxu0 0
    %428 = vmatpush1.bf16.msra.mxu0 0
    %429 = vmatprep.subr.bf16.mxu0 0
    %430 = vmatpush1.bf16.msra.mxu0 0
    %431 = vmatprep.mubr.bf16.mxu0 0
    %432 = vmatmul.mubr.bf16.gmra.mrb[0].mxu0 %v394
    %v433 = vpop.f32.mrb[0].mxu0
    %v434 = vadd.f32 %v391, %v433
    %v435 = vpop.f32.mrb[0].mxu0
    %v436 = vpop.f32.mrb[0].mxu0
    %v437 = vadd.f32 %v391, %v436
    %v438 = vpop.f32.mrb[0].mxu0
    %439 = vmatprep.mubr.bf16.mxu0 0
    %440 = vmatmul.mubr.bf16.gmra.mrb[0].mxu0 %v397
    %v441 = vpop.f32.mrb[0].mxu0
    %v442 = vadd.f32 %v391, %v441
    %v443 = vpop.f32.mrb[0].mxu0
    %v444 = vpop.f32.mrb[0].mxu0
    %v445 = vadd.f32 %v391, %v444
    %v446 = vpop.f32.mrb[0].mxu0
    %447 = vdwg.mxu0
    %v448 = vmin.f32 %v434, 0.0
    %v449 = vmin.f32 %v437, 0.0
    %v450 = vmin.f32 %v442, 0.0
    %v451 = vmin.f32 %v445, 0.0
    %v452 = vmul.f32 %v448, 1.442695
    %v453 = vpow.pop %v452
    %v454 = vmul.f32 %v449, 1.442695
    %v455 = vpow.pop %v454
    %v456 = vmul.f32 %v450, 1.442695
    %v457 = vpow.pop %v456
    %v458 = vmul.f32 %v451, 1.442695
    %v459 = vpow.pop %v458
    %v460 = vsub.f32 %v453, 1.0
    %v461 = vsub.f32 %v455, 1.0
    %v462 = vsub.f32 %v457, 1.0
    %v463 = vsub.f32 %v459, 1.0
    %vm464 = vcmp.gt.f32.partialorder %v448, -0.001
    %vm465 = vcmp.gt.f32.partialorder %v449, -0.001
    %vm466 = vcmp.gt.f32.partialorder %v450, -0.001
    %vm467 = vcmp.gt.f32.partialorder %v451, -0.001
    %v468 = vmul.f32 %v448, 0.5
    %v469 = vmul.f32 %v449, 0.5
    %v470 = vmul.f32 %v450, 0.5
    %v471 = vmul.f32 %v451, 0.5
    %v472 = vmul.f32 %v468, %v448
    %v473 = vmul.f32 %v469, %v449
    %v474 = vmul.f32 %v470, %v450
    %v475 = vmul.f32 %v471, %v451
    %v476 = vadd.f32 %v448, %v472
    %v477 = vadd.f32 %v449, %v473
    %v478 = vadd.f32 %v450, %v474
    %v479 = vadd.f32 %v451, %v475
    %v480 = vsel %vm464, %v476, %v460
    %v481 = vsel %vm465, %v477, %v461
    %v482 = vsel %vm466, %v478, %v462
    %v483 = vsel %vm467, %v479, %v463
    %vm484 = vcmp.gt.f32.partialorder %v434, 0.0
    %vm485 = vcmp.gt.f32.partialorder %v437, 0.0
    %vm486 = vcmp.gt.f32.partialorder %v442, 0.0
    %vm487 = vcmp.gt.f32.partialorder %v445, 0.0
    %v488 = vsel %vm484, %v434, %v480
    %v489 = vsel %vm485, %v437, %v481
    %v490 = vsel %vm486, %v442, %v482
    %v491 = vsel %vm487, %v445, %v483
    %492 = vst.msk [vmem:[#allocation5] sm:$0xff] %vm392, %v488
    %493 = vst.msk [vmem:[#allocation5 + $0x8] sm:$0xff] %vm392, %v489
    %494 = vst.msk [vmem:[#allocation5 + $0x10] sm:$0xff] %vm392, %v490
    %495 = vst.msk [vmem:[#allocation5 + $0x18] sm:$0xff] %vm392, %v491
    %v496 = vld [vmem:[#allocation6 + $0x1b8] sm:$0x1]
    %v497 = vlaneseq
    %v498 = vshrl.u32 %v497, 7
    %v499 = vsub.s32 0, %v498
    %v500 = vrot.slane %v496, %v499
    %501 = vst.msk [vmem:[#allocation3] sm:$0xff] %vm392, %v500
    %502 = vst.msk [vmem:[#allocation3 + $0x8] sm:$0xff] %vm392, %v500
    %503 = vst.msk [vmem:[#allocation3 + $0x10] sm:$0xff] %vm392, %v500
    %v504 = vld [vmem:[#allocation6 + $0x1b0] sm:$0x1]
    %v505 = vlaneseq
    %v506 = vshrl.u32 %v505, 7
    %v507 = vsub.s32 0, %v506
    %v508 = vrot.slane %v504, %v507
    %509 = vst.msk [vmem:[#allocation4] sm:$0xff] %vm392, %v508
    %510 = vst.msk [vmem:[#allocation4 + $0x8] sm:$0xff] %vm392, %v508
    %511 = vst.msk [vmem:[#allocation4 + $0x10] sm:$0xff] %vm392, %v508
    %v512 = vld [vmem:[#allocation5] sm:$0xff]
    %v513 = vld [vmem:[#allocation5 + $0x8] sm:$0xff]
    %v514 = vld [vmem:[#allocation5 + $0x10] sm:$0xff]
    %v515 = vld [vmem:[#allocation5 + $0x18] sm:$0xff]
    %v516 = vld [vmem:[#allocation6 + $0x1c0] sm:$0xff]
    %v517 = vld [vmem:[#allocation6 + $0x1c8] sm:$0xff]
    %v518 = vld [vmem:[#allocation6 + $0x1d0] sm:$0xff]
    %v519 = vld [vmem:[#allocation6 + $0x1d8] sm:$0xff]
    %v520 = vld [vmem:[#allocation6 + $0x1e0] sm:$0xff]
    %v521 = vld [vmem:[#allocation6 + $0x1e8] sm:$0xff]
    %v522 = vld [vmem:[#allocation6 + $0x1f0] sm:$0xff]
    %v523 = vld [vmem:[#allocation6 + $0x1f8] sm:$0xff]
    %v524 = vld [vmem:[#allocation6 + $0x200] sm:$0x1]
    %v525 = vpack.c.bf16 %v513, %v512
    %v526 = vpack.c.bf16 %v517, %v516
    %v527 = vpack.c.bf16 %v519, %v518
    %v528 = vlaneseq
    %v529 = vshrl.u32 %v528, 7
    %v530 = vsub.s32 0, %v529
    %v531 = vrot.slane %v524, %v530
    %v533 = vsel %vm392, %v525, 0
    %535 = vmatprep.subr.bf16.mxu0 0
    %536 = vmatpush1.bf16.msra.mxu0 %v526
    %537 = vmatprep.subr.bf16.mxu0 0
    %538 = vmatpush1.bf16.msra.mxu0 %v527
    %539 = vmatprep.subr.bf16.mxu0 0
    %540 = vmatpush1.bf16.msra.mxu0 0
    %541 = vmatprep.subr.bf16.mxu0 0
    %542 = vmatpush1.bf16.msra.mxu0 0
    %543 = vmatprep.subr.bf16.mxu0 0
    %544 = vmatpush1.bf16.msra.mxu0 0
    %545 = vmatprep.subr.bf16.mxu0 0
    %546 = vmatpush1.bf16.msra.mxu0 0
    %547 = vmatprep.subr.bf16.mxu0 0
    %548 = vmatpush1.bf16.msra.mxu0 0
    %549 = vmatprep.subr.bf16.mxu0 0
    %550 = vmatpush1.bf16.msra.mxu0 0
    %551 = vmatprep.subr.bf16.mxu0 0
    %552 = vmatpush1.bf16.msra.mxu0 0
    %553 = vmatprep.subr.bf16.mxu0 0
    %554 = vmatpush1.bf16.msra.mxu0 0
    %555 = vmatprep.subr.bf16.mxu0 0
    %556 = vmatpush1.bf16.msra.mxu0 0
    %557 = vmatprep.subr.bf16.mxu0 0
    %558 = vmatpush1.bf16.msra.mxu0 0
    %559 = vmatprep.subr.bf16.mxu0 0
    %560 = vmatpush1.bf16.msra.mxu0 0
    %561 = vmatprep.subr.bf16.mxu0 0
    %562 = vmatpush1.bf16.msra.mxu0 0
    %563 = vmatprep.subr.bf16.mxu0 0
    %564 = vmatpush1.bf16.msra.mxu0 0
    %565 = vmatprep.subr.bf16.mxu0 0
    %566 = vmatpush1.bf16.msra.mxu0 0
    %567 = vmatprep.mubr.bf16.mxu0 0
    %568 = vmatmul.mubr.bf16.gmra.mrb[0].mxu0 %v533
    %v569 = vpop.f32.mrb[0].mxu0
    %v570 = vadd.f32 %v531, %v569
    %v571 = vpop.f32.mrb[0].mxu0
    %v572 = vpop.f32.mrb[0].mxu0
    %v573 = vadd.f32 %v531, %v572
    %v574 = vpop.f32.mrb[0].mxu0
    %575 = vdwg.mxu0
    %v576 = vpack.c.bf16 %v515, %v514
    %v578 = vsel %vm392, %v576, 0
    %580 = vmatprep.subr.bf16.mxu0 0
    %581 = vmatpush1.bf16.msra.mxu0 %v526
    %582 = vmatprep.subr.bf16.mxu0 0
    %583 = vmatpush1.bf16.msra.mxu0 %v527
    %584 = vmatprep.subr.bf16.mxu0 0
    %585 = vmatpush1.bf16.msra.mxu0 0
    %586 = vmatprep.subr.bf16.mxu0 0
    %587 = vmatpush1.bf16.msra.mxu0 0
    %588 = vmatprep.subr.bf16.mxu0 0
    %589 = vmatpush1.bf16.msra.mxu0 0
    %590 = vmatprep.subr.bf16.mxu0 0
    %591 = vmatpush1.bf16.msra.mxu0 0
    %592 = vmatprep.subr.bf16.mxu0 0
    %593 = vmatpush1.bf16.msra.mxu0 0
    %594 = vmatprep.subr.bf16.mxu0 0
    %595 = vmatpush1.bf16.msra.mxu0 0
    %596 = vmatprep.subr.bf16.mxu0 0
    %597 = vmatpush1.bf16.msra.mxu0 0
    %598 = vmatprep.subr.bf16.mxu0 0
    %599 = vmatpush1.bf16.msra.mxu0 0
    %600 = vmatprep.subr.bf16.mxu0 0
    %601 = vmatpush1.bf16.msra.mxu0 0
    %602 = vmatprep.subr.bf16.mxu0 0
    %603 = vmatpush1.bf16.msra.mxu0 0
    %604 = vmatprep.subr.bf16.mxu0 0
    %605 = vmatpush1.bf16.msra.mxu0 0
    %606 = vmatprep.subr.bf16.mxu0 0
    %607 = vmatpush1.bf16.msra.mxu0 0
    %608 = vmatprep.subr.bf16.mxu0 0
    %609 = vmatpush1.bf16.msra.mxu0 0
    %610 = vmatprep.subr.bf16.mxu0 0
    %611 = vmatpush1.bf16.msra.mxu0 0
    %612 = vmatprep.mubr.bf16.mxu0 0
    %613 = vmatmul.mubr.bf16.gmra.mrb[0].mxu0 %v578
    %v614 = vpop.f32.mrb[0].mxu0
    %v615 = vadd.f32 %v531, %v614
    %v616 = vpop.f32.mrb[0].mxu0
    %v617 = vpop.f32.mrb[0].mxu0
    %v618 = vadd.f32 %v531, %v617
    %v619 = vpop.f32.mrb[0].mxu0
    %620 = vdwg.mxu0
    %v621 = vxor.u32 %v570, 2147483648
    %v622 = vxor.u32 %v573, 2147483648
    %v623 = vmul.f32 %v621, 1.442695
    %v624 = vpow.pop %v623
    %v625 = vmul.f32 %v622, 1.442695
    %v626 = vpow.pop %v625
    %v627 = vadd.f32 %v624, 1.0
    %v628 = vadd.f32 %v626, 1.0
    %v629 = vrcp.pop %v627
    %v630 = vmul.f32 1.0, %v629
    %v631 = vrcp.pop %v628
    %v632 = vmul.f32 1.0, %v631
    %v633 = vtanh.pop %v570
    %v634 = vtanh.pop %v573
    %637 = vrot.lane.b32.xlu0 %v633, 64
    %v638 = vpop.permute.xlu0 %637
    %639 = vrot.lane.b32.xlu0 %v634, 64
    %v640 = vpop.permute.xlu0 %639
    %v643 = vmul.f32 %v630, %v638
    %v644 = vmul.f32 %v632, %v640
    %v645 = vtanh.pop %v643
    %v646 = vtanh.pop %v644
    %649 = vrot.lane.b32.xlu0 %v645, 96
    %v650 = vpop.permute.xlu0 %649
    %651 = vrot.lane.b32.xlu0 %v646, 96
    %v652 = vpop.permute.xlu0 %651
    %v655 = vmul.f32 %v630, %v650
    %v656 = vmul.f32 %v632, %v652
    %v657 = vpack.c.bf16 %v656, %v655
    %v658 = vpack.c.bf16 %v521, %v520
    %v659 = vpack.c.bf16 %v523, %v522
    %661 = vrot.lane.b32.xlu0 %v657, 32
    %v662 = vpop.permute.xlu0 %661
    %v664 = vsel %vm392, %v662, 0
    %666 = vmatprep.subr.bf16.mxu0 0
    %667 = vmatpush1.bf16.msra.mxu0 %v658
    %668 = vmatprep.subr.bf16.mxu0 0
    %669 = vmatpush1.bf16.msra.mxu0 %v659
    %670 = vmatprep.subr.bf16.mxu0 0
    %671 = vmatpush1.bf16.msra.mxu0 0
    %672 = vmatprep.subr.bf16.mxu0 0
    %673 = vmatpush1.bf16.msra.mxu0 0
    %674 = vmatprep.subr.bf16.mxu0 0
    %675 = vmatpush1.bf16.msra.mxu0 0
    %676 = vmatprep.subr.bf16.mxu0 0
    %677 = vmatpush1.bf16.msra.mxu0 0
    %678 = vmatprep.subr.bf16.mxu0 0
    %679 = vmatpush1.bf16.msra.mxu0 0
    %680 = vmatprep.subr.bf16.mxu0 0
    %681 = vmatpush1.bf16.msra.mxu0 0
    %682 = vmatprep.subr.bf16.mxu0 0
    %683 = vmatpush1.bf16.msra.mxu0 0
    %684 = vmatprep.subr.bf16.mxu0 0
    %685 = vmatpush1.bf16.msra.mxu0 0
    %686 = vmatprep.subr.bf16.mxu0 0
    %687 = vmatpush1.bf16.msra.mxu0 0
    %688 = vmatprep.subr.bf16.mxu0 0
    %689 = vmatpush1.bf16.msra.mxu0 0
    %690 = vmatprep.subr.bf16.mxu0 0
    %691 = vmatpush1.bf16.msra.mxu0 0
    %692 = vmatprep.subr.bf16.mxu0 0
    %693 = vmatpush1.bf16.msra.mxu0 0
    %694 = vmatprep.subr.bf16.mxu0 0
    %695 = vmatpush1.bf16.msra.mxu0 0
    %696 = vmatprep.subr.bf16.mxu0 0
    %697 = vmatpush1.bf16.msra.mxu0 0
    %698 = vmatprep.mubr.bf16.mxu0 0
    %699 = vmatmul.mubr.bf16.gmra.mrb[0].mxu0 %v664
    %v700 = vpop.f32.mrb[0].mxu0
    %v701 = vadd.f32 0.0, %v700
    %v702 = vpop.f32.mrb[0].mxu0
    %v703 = vpop.f32.mrb[0].mxu0
    %v704 = vadd.f32 0.0, %v703
    %v705 = vpop.f32.mrb[0].mxu0
    %706 = vdwg.mxu0
    %v707 = vadd.f32 %v615, %v701
    %v708 = vadd.f32 %v618, %v704
    %v709 = vxor.u32 %v707, 2147483648
    %v710 = vxor.u32 %v708, 2147483648
    %v711 = vmul.f32 %v709, 1.442695
    %v712 = vpow.pop %v711
    %v713 = vmul.f32 %v710, 1.442695
    %v714 = vpow.pop %v713
    %v715 = vadd.f32 %v712, 1.0
    %v716 = vadd.f32 %v714, 1.0
    %v717 = vrcp.pop %v715
    %v718 = vmul.f32 1.0, %v717
    %v719 = vrcp.pop %v716
    %v720 = vmul.f32 1.0, %v719
    %v721 = vtanh.pop %v707
    %v722 = vtanh.pop %v708
    %725 = vrot.lane.b32.xlu0 %v643, 32
    %v726 = vpop.permute.xlu0 %725
    %727 = vrot.lane.b32.xlu0 %v644, 32
    %v728 = vpop.permute.xlu0 %727
    %v731 = vmul.f32 %v718, %v726
    %v732 = vmul.f32 %v720, %v728
    %735 = vrot.lane.b32.xlu0 %v721, 64
    %v736 = vpop.permute.xlu0 %735
    %737 = vrot.lane.b32.xlu0 %v722, 64
    %v738 = vpop.permute.xlu0 %737
    %v741 = vmul.f32 %v718, %v736
    %v742 = vmul.f32 %v720, %v738
    %745 = vrot.lane.b32.xlu0 %v741, 32
    %v746 = vpop.permute.xlu0 %745
    %747 = vrot.lane.b32.xlu0 %v742, 32
    %v748 = vpop.permute.xlu0 %747
    %v751 = vadd.f32 %v731, %v746
    %v752 = vadd.f32 %v732, %v748
    %v753 = vtanh.pop %v751
    %v754 = vtanh.pop %v752
    %757 = vrot.lane.b32.xlu0 %v753, 64
    %v758 = vpop.permute.xlu0 %757
    %759 = vrot.lane.b32.xlu0 %v754, 64
    %v760 = vpop.permute.xlu0 %759
    %v763 = vmul.f32 %v718, %v758
    %v764 = vmul.f32 %v720, %v760
    %766 = vrot.lane.b32.xlu0 %v763, 32
    %v767 = vpop.permute.xlu0 %766
    %769 = vst.msk [vmem:[#allocation4 + $0x8] sm:$0xff] %vm392, %v767
    %771 = vrot.lane.b32.xlu0 %v764, 32
    %v772 = vpop.permute.xlu0 %771
    %774 = vst.msk [vmem:[#allocation4 + $0x10] sm:$0xff] %vm392, %v772
    %v775 = vld [vmem:[#allocation3 + $0x8] sm:$0xff]
    %v776 = vld [vmem:[#allocation3 + $0x10] sm:$0xff]
    %v777 = vld [vmem:[#allocation4 + $0x8] sm:$0xff]
    %v778 = vld [vmem:[#allocation4 + $0x10] sm:$0xff]
    %v779 = vld [vmem:[%s2 + $0x8] sm:$0xff]
    %v780 = vld [vmem:[%s2 + $0x10] sm:$0xff]
    %v781 = vld [vmem:[#allocation6 + $0x110] sm:$0xff]
    %v782 = vld [vmem:[#allocation6 + $0x118] sm:$0xff]
    %v783 = vld [vmem:[#allocation6 + $0x120] sm:$0xff]
    %v784 = vld [vmem:[#allocation6 + $0x128] sm:$0xff]
    %v785 = vpack.c.bf16 %v776, %v775
    %v786 = vpack.c.bf16 %v782, %v781
    %v787 = vpack.c.bf16 %v784, %v783
    %v788 = vld [vmem:[#allocation6 + $0x130] sm:$0xff]
    %v789 = vld [vmem:[#allocation6 + $0x138] sm:$0xff]
    %v790 = vld [vmem:[#allocation6 + $0x140] sm:$0xff]
    %v791 = vld [vmem:[#allocation6 + $0x148] sm:$0xff]
    %v792 = vpack.c.bf16 %v778, %v777
    %v793 = vpack.c.bf16 %v789, %v788
    %v794 = vpack.c.bf16 %v791, %v790
    %v796 = vsel %vm392, %v792, 0
    %798 = vmatprep.subr.bf16.mxu0 0
    %799 = vmatpush1.bf16.msra.mxu0 %v793
    %800 = vmatprep.subr.bf16.mxu0 0
    %801 = vmatpush1.bf16.msra.mxu0 %v794
    %802 = vmatprep.subr.bf16.mxu0 0
    %803 = vmatpush1.bf16.msra.mxu0 0
    %804 = vmatprep.subr.bf16.mxu0 0
    %805 = vmatpush1.bf16.msra.mxu0 0
    %806 = vmatprep.subr.bf16.mxu0 0
    %807 = vmatpush1.bf16.msra.mxu0 0
    %808 = vmatprep.subr.bf16.mxu0 0
    %809 = vmatpush1.bf16.msra.mxu0 0
    %810 = vmatprep.subr.bf16.mxu0 0
    %811 = vmatpush1.bf16.msra.mxu0 0
    %812 = vmatprep.subr.bf16.mxu0 0
    %813 = vmatpush1.bf16.msra.mxu0 0
    %814 = vmatprep.subr.bf16.mxu0 0
    %815 = vmatpush1.bf16.msra.mxu0 0
    %816 = vmatprep.subr.bf16.mxu0 0
    %817 = vmatpush1.bf16.msra.mxu0 0
    %818 = vmatprep.subr.bf16.mxu0 0
    %819 = vmatpush1.bf16.msra.mxu0 0
    %820 = vmatprep.subr.bf16.mxu0 0
    %821 = vmatpush1.bf16.msra.mxu0 0
    %822 = vmatprep.subr.bf16.mxu0 0
    %823 = vmatpush1.bf16.msra.mxu0 0
    %824 = vmatprep.subr.bf16.mxu0 0
    %825 = vmatpush1.bf16.msra.mxu0 0
    %826 = vmatprep.subr.bf16.mxu0 0
    %827 = vmatpush1.bf16.msra.mxu0 0
    %828 = vmatprep.subr.bf16.mxu0 0
    %829 = vmatpush1.bf16.msra.mxu0 0
    %830 = vmatprep.mubr.bf16.mxu0 0
    %831 = vmatmul.mubr.bf16.gmra.mrb[0].mxu0 %v796
    %v832 = vpop.f32.mrb[0].mxu0
    %v833 = vadd.f32 0.0, %v832
    %v834 = vpop.f32.mrb[0].mxu0
    %v835 = vpop.f32.mrb[0].mxu0
    %v836 = vadd.f32 0.0, %v835
    %v837 = vpop.f32.mrb[0].mxu0
    %838 = vdwg.mxu0
    %v840 = vsel %vm392, %v785, 0
    %842 = vmatprep.subr.bf16.mxu0 0
    %843 = vmatpush1.bf16.msra.mxu0 %v786
    %844 = vmatprep.subr.bf16.mxu0 0
    %845 = vmatpush1.bf16.msra.mxu0 %v787
    %846 = vmatprep.subr.bf16.mxu0 0
    %847 = vmatpush1.bf16.msra.mxu0 0
    %848 = vmatprep.subr.bf16.mxu0 0
    %849 = vmatpush1.bf16.msra.mxu0 0
    %850 = vmatprep.subr.bf16.mxu0 0
    %851 = vmatpush1.bf16.msra.mxu0 0
    %852 = vmatprep.subr.bf16.mxu0 0
    %853 = vmatpush1.bf16.msra.mxu0 0
    %854 = vmatprep.subr.bf16.mxu0 0
    %855 = vmatpush1.bf16.msra.mxu0 0
    %856 = vmatprep.subr.bf16.mxu0 0
    %857 = vmatpush1.bf16.msra.mxu0 0
    %858 = vmatprep.subr.bf16.mxu0 0
    %859 = vmatpush1.bf16.msra.mxu0 0
    %860 = vmatprep.subr.bf16.mxu0 0
    %861 = vmatpush1.bf16.msra.mxu0 0
    %862 = vmatprep.subr.bf16.mxu0 0
    %863 = vmatpush1.bf16.msra.mxu0 0
    %864 = vmatprep.subr.bf16.mxu0 0
    %865 = vmatpush1.bf16.msra.mxu0 0
    %866 = vmatprep.subr.bf16.mxu0 0
    %867 = vmatpush1.bf16.msra.mxu0 0
    %868 = vmatprep.subr.bf16.mxu0 0
    %869 = vmatpush1.bf16.msra.mxu0 0
    %870 = vmatprep.subr.bf16.mxu0 0
    %871 = vmatpush1.bf16.msra.mxu0 0
    %872 = vmatprep.subr.bf16.mxu0 0
    %873 = vmatpush1.bf16.msra.mxu0 0
    %874 = vmatprep.mubr.bf16.mxu0 0
    %875 = vmatmul.mubr.bf16.gmra.mrb[0].mxu0 %v840
    %v876 = vpop.f32.mrb[0].mxu0
    %v877 = vadd.f32 %v833, %v876
    %v878 = vpop.f32.mrb[0].mxu0
    %v879 = vpop.f32.mrb[0].mxu0
    %v880 = vadd.f32 %v836, %v879
    %v881 = vpop.f32.mrb[0].mxu0
    %882 = vdwg.mxu0
    %v883 = vld [vmem:[#allocation6 + $0x158] sm:$0x1]
    %v884 = vlaneseq
    %v885 = vshrl.u32 %v884, 7
    %v886 = vsub.s32 0, %v885
    %v887 = vrot.slane %v883, %v886
    %v888 = vadd.f32 %v877, %v887
    %v889 = vadd.f32 %v880, %v887
    %v890 = vld [vmem:[#allocation6 + $0x150] sm:$0x7]
    %892 = vset.pattern.permute.xlu0 0
    %893 = vperm.xlu0 %892, %v779
    %v894 = vpop.permute.xlu0 %893
    %897 = vset.pattern.permute.xlu0 0
    %898 = vperm.xlu0 %897, %v780
    %v899 = vpop.permute.xlu0 %898
    %v901 = vlaneseq
    %v902 = vshrl.u32 %v901, 7
    %v903 = vsub.s32 0, %v902
    %v904 = vrot.slane %v890, %v903
    %v905 = vmul.f32 %v894, %v904
    %v906 = vmul.f32 %v899, %v904
    %v907 = vadd.f32 %v888, %v905
    %v908 = vadd.f32 %v889, %v906
    %909 = vset.pattern.permute.xlu0 1
    %910 = vperm.xlu0 %909, %v779
    %v911 = vpop.permute.xlu0 %910
    %913 = vset.pattern.permute.xlu0 1
    %914 = vperm.xlu0 %913, %v780
    %v915 = vpop.permute.xlu0 %914
    %v917 = vlaneseq
    %v918 = vshrl.u32 %v917, 7
    %v919 = vsub.s32 1, %v918
    %v920 = vrot.slane %v890, %v919
    %v921 = vmul.f32 %v911, %v920
    %v922 = vmul.f32 %v915, %v920
    %v923 = vadd.f32 %v907, %v921
    %v924 = vadd.f32 %v908, %v922
    %925 = vset.pattern.permute.xlu0 2
    %926 = vperm.xlu0 %925, %v779
    %v927 = vpop.permute.xlu0 %926
    %929 = vset.pattern.permute.xlu0 2
    %930 = vperm.xlu0 %929, %v780
    %v931 = vpop.permute.xlu0 %930
    %v933 = vlaneseq
    %v934 = vshrl.u32 %v933, 7
    %v935 = vsub.s32 2, %v934
    %v936 = vrot.slane %v890, %v935
    %v937 = vmul.f32 %v927, %v936
    %v938 = vmul.f32 %v931, %v936
    %v939 = vadd.f32 %v923, %v937
    %v940 = vadd.f32 %v924, %v938
    %v941 = vmin.f32 %v939, 0.0
    %v942 = vmin.f32 %v940, 0.0
    %v943 = vmul.f32 %v941, 1.442695
    %v944 = vpow.pop %v943
    %v945 = vmul.f32 %v942, 1.442695
    %v946 = vpow.pop %v945
    %v947 = vsub.f32 %v944, 1.0
    %v948 = vsub.f32 %v946, 1.0
    %vm949 = vcmp.gt.f32.partialorder %v941, -0.001
    %vm950 = vcmp.gt.f32.partialorder %v942, -0.001
    %v951 = vmul.f32 %v941, 0.5
    %v952 = vmul.f32 %v942, 0.5
    %v953 = vmul.f32 %v951, %v941
    %v954 = vmul.f32 %v952, %v942
    %v955 = vadd.f32 %v941, %v953
    %v956 = vadd.f32 %v942, %v954
    %v957 = vsel %vm949, %v955, %v947
    %v958 = vsel %vm950, %v956, %v948
    %vm959 = vcmp.gt.f32.partialorder %v939, 0.0
    %vm960 = vcmp.gt.f32.partialorder %v940, 0.0
    %v961 = vsel %vm959, %v939, %v957
    %v962 = vsel %vm960, %v940, %v958
    %v963 = vld [vmem:[#allocation6 + $0x160] sm:$0xff]
    %v964 = vld [vmem:[#allocation6 + $0x168] sm:$0xff]
    %v965 = vld [vmem:[#allocation6 + $0x170] sm:$0xff]
    %v966 = vld [vmem:[#allocation6 + $0x178] sm:$0xff]
    %v967 = vpack.c.bf16 %v962, %v961
    %v968 = vpack.c.bf16 %v964, %v963
    %v969 = vpack.c.bf16 %v966, %v965
    %v970 = vld [vmem:[#allocation6 + $0x180] sm:$0x1]
    %v971 = vlaneseq
    %v972 = vshrl.u32 %v971, 7
    %v973 = vsub.s32 0, %v972
    %v974 = vrot.slane %v970, %v973
    %v976 = vsel %vm392, %v967, 0
    %978 = vmatprep.subr.bf16.mxu0 0
    %979 = vmatpush1.bf16.msra.mxu0 %v968
    %980 = vmatprep.subr.bf16.mxu0 0
    %981 = vmatpush1.bf16.msra.mxu0 %v969
    %982 = vmatprep.subr.bf16.mxu0 0
    %983 = vmatpush1.bf16.msra.mxu0 0
    %984 = vmatprep.subr.bf16.mxu0 0
    %985 = vmatpush1.bf16.msra.mxu0 0
    %986 = vmatprep.subr.bf16.mxu0 0
    %987 = vmatpush1.bf16.msra.mxu0 0
    %988 = vmatprep.subr.bf16.mxu0 0
    %989 = vmatpush1.bf16.msra.mxu0 0
    %990 = vmatprep.subr.bf16.mxu0 0
    %991 = vmatpush1.bf16.msra.mxu0 0
    %992 = vmatprep.subr.bf16.mxu0 0
    %993 = vmatpush1.bf16.msra.mxu0 0
    %994 = vmatprep.subr.bf16.mxu0 0
    %995 = vmatpush1.bf16.msra.mxu0 0
    %996 = vmatprep.subr.bf16.mxu0 0
    %997 = vmatpush1.bf16.msra.mxu0 0
    %998 = vmatprep.subr.bf16.mxu0 0
    %999 = vmatpush1.bf16.msra.mxu0 0
    %1000 = vmatprep.subr.bf16.mxu0 0
    %1001 = vmatpush1.bf16.msra.mxu0 0
    %1002 = vmatprep.subr.bf16.mxu0 0
    %1003 = vmatpush1.bf16.msra.mxu0 0
    %1004 = vmatprep.subr.bf16.mxu0 0
    %1005 = vmatpush1.bf16.msra.mxu0 0
    %1006 = vmatprep.subr.bf16.mxu0 0
    %1007 = vmatpush1.bf16.msra.mxu0 0
    %1008 = vmatprep.subr.bf16.mxu0 0
    %1009 = vmatpush1.bf16.msra.mxu0 0
    %1010 = vmatprep.mubr.bf16.mxu0 0
    %1011 = vmatmul.mubr.bf16.gmra.mrb[0].mxu0 %v976
    %v1012 = vpop.f32.mrb[0].mxu0
    %v1013 = vadd.f32 %v974, %v1012
    %v1014 = vpop.f32.mrb[0].mxu0
    %v1015 = vpop.f32.mrb[0].mxu0
    %v1016 = vadd.f32 %v974, %v1015
    %v1017 = vpop.f32.mrb[0].mxu0
    %1018 = vdwg.mxu0
    %v1019 = vmin.f32 %v1013, 0.0
    %v1020 = vmin.f32 %v1016, 0.0
    %v1021 = vmul.f32 %v1019, 1.442695
    %v1022 = vpow.pop %v1021
    %v1023 = vmul.f32 %v1020, 1.442695
    %v1024 = vpow.pop %v1023
    %v1025 = vsub.f32 %v1022, 1.0
    %v1026 = vsub.f32 %v1024, 1.0
    %vm1027 = vcmp.gt.f32.partialorder %v1019, -0.001
    %vm1028 = vcmp.gt.f32.partialorder %v1020, -0.001
    %v1029 = vmul.f32 %v1019, 0.5
    %v1030 = vmul.f32 %v1020, 0.5
    %v1031 = vmul.f32 %v1029, %v1019
    %v1032 = vmul.f32 %v1030, %v1020
    %v1033 = vadd.f32 %v1019, %v1031
    %v1034 = vadd.f32 %v1020, %v1032
    %v1035 = vsel %vm1027, %v1033, %v1025
    %v1036 = vsel %vm1028, %v1034, %v1026
    %vm1037 = vcmp.gt.f32.partialorder %v1013, 0.0
    %vm1038 = vcmp.gt.f32.partialorder %v1016, 0.0
    %v1039 = vsel %vm1037, %v1013, %v1035
    %v1040 = vsel %vm1038, %v1016, %v1036
    %1041 = vst.msk [vmem:[#allocation2 + $0x8] sm:$0xff] %vm392, %v1039
    %1042 = vst.msk [vmem:[#allocation2 + $0x10] sm:$0xff] %vm392, %v1040
    %v1043 = vld [vmem:[#allocation2 + $0x8] sm:$0xff]
    %v1044 = vld [vmem:[#allocation2 + $0x10] sm:$0xff]
    %v1045 = vld [vmem:[#allocation6 + $0x208] sm:$0xff]
    %v1046 = vld [vmem:[#allocation6 + $0x210] sm:$0xff]
    %v1047 = vld [vmem:[#allocation6 + $0x218] sm:$0xff]
    %v1048 = vld [vmem:[#allocation6 + $0x220] sm:$0xff]
    %v1049 = vld [vmem:[#allocation6 + $0x228] sm:$0xff]
    %v1050 = vld [vmem:[#allocation6 + $0x230] sm:$0xff]
    %v1051 = vld [vmem:[#allocation6 + $0x238] sm:$0xff]
    %v1052 = vld [vmem:[#allocation6 + $0x240] sm:$0xff]
    %v1053 = vld [vmem:[#allocation6 + $0x248] sm:$0x1]
    %v1054 = vpack.c.bf16 %v1043, %v1043
    %v1055 = vpack.c.bf16 %v1046, %v1045
    %v1056 = vpack.c.bf16 %v1048, %v1047
    %v1057 = vlaneseq
    %v1058 = vshrl.u32 %v1057, 7
    %v1059 = vsub.s32 0, %v1058
    %v1060 = vrot.slane %v1053, %v1059
    %v1062 = vsel %vm392, %v1054, 0
    %1064 = vmatprep.subr.bf16.mxu0 0
    %1065 = vmatpush1.bf16.msra.mxu0 %v1055
    %1066 = vmatprep.subr.bf16.mxu0 0
    %1067 = vmatpush1.bf16.msra.mxu0 %v1056
    %1068 = vmatprep.subr.bf16.mxu0 0
    %1069 = vmatpush1.bf16.msra.mxu0 0
    %1070 = vmatprep.subr.bf16.mxu0 0
    %1071 = vmatpush1.bf16.msra.mxu0 0
    %1072 = vmatprep.subr.bf16.mxu0 0
    %1073 = vmatpush1.bf16.msra.mxu0 0
    %1074 = vmatprep.subr.bf16.mxu0 0
    %1075 = vmatpush1.bf16.msra.mxu0 0
    %1076 = vmatprep.subr.bf16.mxu0 0
    %1077 = vmatpush1.bf16.msra.mxu0 0
    %1078 = vmatprep.subr.bf16.mxu0 0
    %1079 = vmatpush1.bf16.msra.mxu0 0
    %1080 = vmatprep.subr.bf16.mxu0 0
    %1081 = vmatpush1.bf16.msra.mxu0 0
    %1082 = vmatprep.subr.bf16.mxu0 0
    %1083 = vmatpush1.bf16.msra.mxu0 0
    %1084 = vmatprep.subr.bf16.mxu0 0
    %1085 = vmatpush1.bf16.msra.mxu0 0
    %1086 = vmatprep.subr.bf16.mxu0 0
    %1087 = vmatpush1.bf16.msra.mxu0 0
    %1088 = vmatprep.subr.bf16.mxu0 0
    %1089 = vmatpush1.bf16.msra.mxu0 0
    %1090 = vmatprep.subr.bf16.mxu0 0
    %1091 = vmatpush1.bf16.msra.mxu0 0
    %1092 = vmatprep.subr.bf16.mxu0 0
    %1093 = vmatpush1.bf16.msra.mxu0 0
    %1094 = vmatprep.subr.bf16.mxu0 0
    %1095 = vmatpush1.bf16.msra.mxu0 0
    %1096 = vmatprep.mubr.bf16.mxu0 0
    %1097 = vmatmul.mubr.bf16.gmra.mrb[0].mxu0 %v1062
    %v1098 = vpop.f32.mrb[0].mxu0
    %v1099 = vadd.f32 %v1060, %v1098
    %v1100 = vpop.f32.mrb[0].mxu0
    %v1101 = vpop.f32.mrb[0].mxu0
    %v1102 = vpop.f32.mrb[0].mxu0
    %1103 = vdwg.mxu0
    %v1104 = vpack.c.bf16 %v1044, %v1044
    %v1106 = vsel %vm392, %v1104, 0
    %1108 = vmatprep.subr.bf16.mxu0 0
    %1109 = vmatpush1.bf16.msra.mxu0 %v1055
    %1110 = vmatprep.subr.bf16.mxu0 0
    %1111 = vmatpush1.bf16.msra.mxu0 %v1056
    %1112 = vmatprep.subr.bf16.mxu0 0
    %1113 = vmatpush1.bf16.msra.mxu0 0
    %1114 = vmatprep.subr.bf16.mxu0 0
    %1115 = vmatpush1.bf16.msra.mxu0 0
    %1116 = vmatprep.subr.bf16.mxu0 0
    %1117 = vmatpush1.bf16.msra.mxu0 0
    %1118 = vmatprep.subr.bf16.mxu0 0
    %1119 = vmatpush1.bf16.msra.mxu0 0
    %1120 = vmatprep.subr.bf16.mxu0 0
    %1121 = vmatpush1.bf16.msra.mxu0 0
    %1122 = vmatprep.subr.bf16.mxu0 0
    %1123 = vmatpush1.bf16.msra.mxu0 0
    %1124 = vmatprep.subr.bf16.mxu0 0
    %1125 = vmatpush1.bf16.msra.mxu0 0
    %1126 = vmatprep.subr.bf16.mxu0 0
    %1127 = vmatpush1.bf16.msra.mxu0 0
    %1128 = vmatprep.subr.bf16.mxu0 0
    %1129 = vmatpush1.bf16.msra.mxu0 0
    %1130 = vmatprep.subr.bf16.mxu0 0
    %1131 = vmatpush1.bf16.msra.mxu0 0
    %1132 = vmatprep.subr.bf16.mxu0 0
    %1133 = vmatpush1.bf16.msra.mxu0 0
    %1134 = vmatprep.subr.bf16.mxu0 0
    %1135 = vmatpush1.bf16.msra.mxu0 0
    %1136 = vmatprep.subr.bf16.mxu0 0
    %1137 = vmatpush1.bf16.msra.mxu0 0
    %1138 = vmatprep.subr.bf16.mxu0 0
    %1139 = vmatpush1.bf16.msra.mxu0 0
    %1140 = vmatprep.mubr.bf16.mxu0 0
    %1141 = vmatmul.mubr.bf16.gmra.mrb[0].mxu0 %v1106
    %v1142 = vpop.f32.mrb[0].mxu0
    %v1143 = vadd.f32 %v1060, %v1142
    %v1144 = vpop.f32.mrb[0].mxu0
    %v1145 = vpop.f32.mrb[0].mxu0
    %v1146 = vpop.f32.mrb[0].mxu0
    %1147 = vdwg.mxu0
    %v1148 = vxor.u32 %v1099, 2147483648
    %v1149 = vmul.f32 %v1148, 1.442695
    %v1150 = vpow.pop %v1149
    %v1151 = vadd.f32 %v1150, 1.0
    %v1152 = vrcp.pop %v1151
    %v1153 = vmul.f32 1.0, %v1152
    %v1154 = vtanh.pop %v1099
    %1156 = vrot.lane.b32.xlu0 %v1154, 64
    %v1157 = vpop.permute.xlu0 %1156
    %v1159 = vmul.f32 %v1153, %v1157
    %v1160 = vtanh.pop %v1159
    %1162 = vrot.lane.b32.xlu0 %v1160, 96
    %v1163 = vpop.permute.xlu0 %1162
    %v1165 = vmul.f32 %v1153, %v1163
    %v1166 = vpack.c.bf16 %v1165, %v1165
    %v1167 = vpack.c.bf16 %v1050, %v1049
    %v1168 = vpack.c.bf16 %v1052, %v1051
    %1170 = vrot.lane.b32.xlu0 %v1166, 32
    %v1171 = vpop.permute.xlu0 %1170
    %v1173 = vsel %vm392, %v1171, 0
    %1175 = vmatprep.subr.bf16.mxu0 0
    %1176 = vmatpush1.bf16.msra.mxu0 %v1167
    %1177 = vmatprep.subr.bf16.mxu0 0
    %1178 = vmatpush1.bf16.msra.mxu0 %v1168
    %1179 = vmatprep.subr.bf16.mxu0 0
    %1180 = vmatpush1.bf16.msra.mxu0 0
    %1181 = vmatprep.subr.bf16.mxu0 0
    %1182 = vmatpush1.bf16.msra.mxu0 0
    %1183 = vmatprep.subr.bf16.mxu0 0
    %1184 = vmatpush1.bf16.msra.mxu0 0
    %1185 = vmatprep.subr.bf16.mxu0 0
    %1186 = vmatpush1.bf16.msra.mxu0 0
    %1187 = vmatprep.subr.bf16.mxu0 0
    %1188 = vmatpush1.bf16.msra.mxu0 0
    %1189 = vmatprep.subr.bf16.mxu0 0
    %1190 = vmatpush1.bf16.msra.mxu0 0
    %1191 = vmatprep.subr.bf16.mxu0 0
    %1192 = vmatpush1.bf16.msra.mxu0 0
    %1193 = vmatprep.subr.bf16.mxu0 0
    %1194 = vmatpush1.bf16.msra.mxu0 0
    %1195 = vmatprep.subr.bf16.mxu0 0
    %1196 = vmatpush1.bf16.msra.mxu0 0
    %1197 = vmatprep.subr.bf16.mxu0 0
    %1198 = vmatpush1.bf16.msra.mxu0 0
    %1199 = vmatprep.subr.bf16.mxu0 0
    %1200 = vmatpush1.bf16.msra.mxu0 0
    %1201 = vmatprep.subr.bf16.mxu0 0
    %1202 = vmatpush1.bf16.msra.mxu0 0
    %1203 = vmatprep.subr.bf16.mxu0 0
    %1204 = vmatpush1.bf16.msra.mxu0 0
    %1205 = vmatprep.subr.bf16.mxu0 0
    %1206 = vmatpush1.bf16.msra.mxu0 0
    %1207 = vmatprep.mubr.bf16.mxu0 0
    %1208 = vmatmul.mubr.bf16.gmra.mrb[0].mxu0 %v1173
    %v1209 = vpop.f32.mrb[0].mxu0
    %v1210 = vadd.f32 0.0, %v1209
    %v1211 = vpop.f32.mrb[0].mxu0
    %v1212 = vpop.f32.mrb[0].mxu0
    %v1213 = vpop.f32.mrb[0].mxu0
    %1214 = vdwg.mxu0
    %v1215 = vadd.f32 %v1143, %v1210
    %v1216 = vxor.u32 %v1215, 2147483648
    %v1217 = vmul.f32 %v1216, 1.442695
    %v1218 = vpow.pop %v1217
    %v1219 = vadd.f32 %v1218, 1.0
    %v1220 = vrcp.pop %v1219
    %v1221 = vmul.f32 1.0, %v1220
    %v1222 = vtanh.pop %v1215
    %1224 = vrot.lane.b32.xlu0 %v1159, 32
    %v1225 = vpop.permute.xlu0 %1224
    %v1227 = vmul.f32 %v1221, %v1225
    %1229 = vrot.lane.b32.xlu0 %v1222, 64
    %v1230 = vpop.permute.xlu0 %1229
    %v1232 = vmul.f32 %v1221, %v1230
    %1234 = vrot.lane.b32.xlu0 %v1232, 32
    %v1235 = vpop.permute.xlu0 %1234
    %v1237 = vadd.f32 %v1227, %v1235
    %v1238 = vtanh.pop %v1237
    %1240 = vrot.lane.b32.xlu0 %v1238, 64
    %v1241 = vpop.permute.xlu0 %1240
    %v1243 = vmul.f32 %v1221, %v1241
    %1245 = vrot.lane.b32.xlu0 %v1243, 32
    %v1246 = vpop.permute.xlu0 %1245
    %1248 = vst.msk [vmem:[#allocation3] sm:$0xff] %vm392, %v1246
    %v1249 = vld [vmem:[#allocation3] sm:$0xff]
    %v1250 = vld [vmem:[#allocation4] sm:$0xff]
    %v1251 = vld [vmem:[%s2] sm:$0xff]
    %v1252 = vld [vmem:[#allocation6 + $0x110] sm:$0xff]
    %v1253 = vld [vmem:[#allocation6 + $0x118] sm:$0xff]
    %v1254 = vld [vmem:[#allocation6 + $0x120] sm:$0xff]
    %v1255 = vld [vmem:[#allocation6 + $0x128] sm:$0xff]
    %v1256 = vpack.c.bf16 %v1249, %v1249
    %v1257 = vpack.c.bf16 %v1253, %v1252
    %v1258 = vpack.c.bf16 %v1255, %v1254
    %v1259 = vld [vmem:[#allocation6 + $0x130] sm:$0xff]
    %v1260 = vld [vmem:[#allocation6 + $0x138] sm:$0xff]
    %v1261 = vld [vmem:[#allocation6 + $0x140] sm:$0xff]
    %v1262 = vld [vmem:[#allocation6 + $0x148] sm:$0xff]
    %v1263 = vpack.c.bf16 %v1250, %v1250
    %v1264 = vpack.c.bf16 %v1260, %v1259
    %v1265 = vpack.c.bf16 %v1262, %v1261
    %v1267 = vsel %vm392, %v1263, 0
    %1269 = vmatprep.subr.bf16.mxu0 0
    %1270 = vmatpush1.bf16.msra.mxu0 %v1264
    %1271 = vmatprep.subr.bf16.mxu0 0
    %1272 = vmatpush1.bf16.msra.mxu0 %v1265
    %1273 = vmatprep.subr.bf16.mxu0 0
    %1274 = vmatpush1.bf16.msra.mxu0 0
    %1275 = vmatprep.subr.bf16.mxu0 0
    %1276 = vmatpush1.bf16.msra.mxu0 0
    %1277 = vmatprep.subr.bf16.mxu0 0
    %1278 = vmatpush1.bf16.msra.mxu0 0
    %1279 = vmatprep.subr.bf16.mxu0 0
    %1280 = vmatpush1.bf16.msra.mxu0 0
    %1281 = vmatprep.subr.bf16.mxu0 0
    %1282 = vmatpush1.bf16.msra.mxu0 0
    %1283 = vmatprep.subr.bf16.mxu0 0
    %1284 = vmatpush1.bf16.msra.mxu0 0
    %1285 = vmatprep.subr.bf16.mxu0 0
    %1286 = vmatpush1.bf16.msra.mxu0 0
    %1287 = vmatprep.subr.bf16.mxu0 0
    %1288 = vmatpush1.bf16.msra.mxu0 0
    %1289 = vmatprep.subr.bf16.mxu0 0
    %1290 = vmatpush1.bf16.msra.mxu0 0
    %1291 = vmatprep.subr.bf16.mxu0 0
    %1292 = vmatpush1.bf16.msra.mxu0 0
    %1293 = vmatprep.subr.bf16.mxu0 0
    %1294 = vmatpush1.bf16.msra.mxu0 0
    %1295 = vmatprep.subr.bf16.mxu0 0
    %1296 = vmatpush1.bf16.msra.mxu0 0
    %1297 = vmatprep.subr.bf16.mxu0 0
    %1298 = vmatpush1.bf16.msra.mxu0 0
    %1299 = vmatprep.subr.bf16.mxu0 0
    %1300 = vmatpush1.bf16.msra.mxu0 0
    %1301 = vmatprep.mubr.bf16.mxu0 0
    %1302 = vmatmul.mubr.bf16.gmra.mrb[0].mxu0 %v1267
    %v1303 = vpop.f32.mrb[0].mxu0
    %v1304 = vadd.f32 0.0, %v1303
    %v1305 = vpop.f32.mrb[0].mxu0
    %v1306 = vpop.f32.mrb[0].mxu0
    %v1307 = vpop.f32.mrb[0].mxu0
    %1308 = vdwg.mxu0
    %v1310 = vsel %vm392, %v1256, 0
    %1312 = vmatprep.subr.bf16.mxu0 0
    %1313 = vmatpush1.bf16.msra.mxu0 %v1257
    %1314 = vmatprep.subr.bf16.mxu0 0
    %1315 = vmatpush1.bf16.msra.mxu0 %v1258
    %1316 = vmatprep.subr.bf16.mxu0 0
    %1317 = vmatpush1.bf16.msra.mxu0 0
    %1318 = vmatprep.subr.bf16.mxu0 0
    %1319 = vmatpush1.bf16.msra.mxu0 0
    %1320 = vmatprep.subr.bf16.mxu0 0
    %1321 = vmatpush1.bf16.msra.mxu0 0
    %1322 = vmatprep.subr.bf16.mxu0 0
    %1323 = vmatpush1.bf16.msra.mxu0 0
    %1324 = vmatprep.subr.bf16.mxu0 0
    %1325 = vmatpush1.bf16.msra.mxu0 0
    %1326 = vmatprep.subr.bf16.mxu0 0
    %1327 = vmatpush1.bf16.msra.mxu0 0
    %1328 = vmatprep.subr.bf16.mxu0 0
    %1329 = vmatpush1.bf16.msra.mxu0 0
    %1330 = vmatprep.subr.bf16.mxu0 0
    %1331 = vmatpush1.bf16.msra.mxu0 0
    %1332 = vmatprep.subr.bf16.mxu0 0
    %1333 = vmatpush1.bf16.msra.mxu0 0
    %1334 = vmatprep.subr.bf16.mxu0 0
    %1335 = vmatpush1.bf16.msra.mxu0 0
    %1336 = vmatprep.subr.bf16.mxu0 0
    %1337 = vmatpush1.bf16.msra.mxu0 0
    %1338 = vmatprep.subr.bf16.mxu0 0
    %1339 = vmatpush1.bf16.msra.mxu0 0
    %1340 = vmatprep.subr.bf16.mxu0 0
    %1341 = vmatpush1.bf16.msra.mxu0 0
    %1342 = vmatprep.subr.bf16.mxu0 0
    %1343 = vmatpush1.bf16.msra.mxu0 0
    %1344 = vmatprep.mubr.bf16.mxu0 0
    %1345 = vmatmul.mubr.bf16.gmra.mrb[0].mxu0 %v1310
    %v1346 = vpop.f32.mrb[0].mxu0
    %v1347 = vadd.f32 %v1304, %v1346
    %v1348 = vpop.f32.mrb[0].mxu0
    %v1349 = vpop.f32.mrb[0].mxu0
    %v1350 = vpop.f32.mrb[0].mxu0
    %1351 = vdwg.mxu0
    %v1352 = vld [vmem:[#allocation6 + $0x158] sm:$0x1]
    %v1353 = vlaneseq
    %v1354 = vshrl.u32 %v1353, 7
    %v1355 = vsub.s32 0, %v1354
    %v1356 = vrot.slane %v1352, %v1355
    %v1357 = vadd.f32 %v1347, %v1356
    %v1358 = vld [vmem:[#allocation6 + $0x150] sm:$0x7]
    %1360 = vset.pattern.permute.xlu0 0
    %1361 = vperm.xlu0 %1360, %v1251
    %v1362 = vpop.permute.xlu0 %1361
    %v1364 = vlaneseq
    %v1365 = vshrl.u32 %v1364, 7
    %v1366 = vsub.s32 0, %v1365
    %v1367 = vrot.slane %v1358, %v1366
    %v1368 = vmul.f32 %v1362, %v1367
    %v1369 = vadd.f32 %v1357, %v1368
    %1370 = vset.pattern.permute.xlu0 1
    %1371 = vperm.xlu0 %1370, %v1251
    %v1372 = vpop.permute.xlu0 %1371
    %v1374 = vlaneseq
    %v1375 = vshrl.u32 %v1374, 7
    %v1376 = vsub.s32 1, %v1375
    %v1377 = vrot.slane %v1358, %v1376
    %v1378 = vmul.f32 %v1372, %v1377
    %v1379 = vadd.f32 %v1369, %v1378
    %1380 = vset.pattern.permute.xlu0 2
    %1381 = vperm.xlu0 %1380, %v1251
    %v1382 = vpop.permute.xlu0 %1381
    %v1384 = vlaneseq
    %v1385 = vshrl.u32 %v1384, 7
    %v1386 = vsub.s32 2, %v1385
    %v1387 = vrot.slane %v1358, %v1386
    %v1388 = vmul.f32 %v1382, %v1387
    %v1389 = vadd.f32 %v1379, %v1388
    %v1390 = vmin.f32 %v1389, 0.0
    %v1391 = vmul.f32 %v1390, 1.442695
    %v1392 = vpow.pop %v1391
    %v1393 = vsub.f32 %v1392, 1.0
    %vm1394 = vcmp.gt.f32.partialorder %v1390, -0.001
    %v1395 = vmul.f32 %v1390, 0.5
    %v1396 = vmul.f32 %v1395, %v1390
    %v1397 = vadd.f32 %v1390, %v1396
    %v1398 = vsel %vm1394, %v1397, %v1393
    %vm1399 = vcmp.gt.f32.partialorder %v1389, 0.0
    %v1400 = vsel %vm1399, %v1389, %v1398
    %v1401 = vld [vmem:[#allocation6 + $0x160] sm:$0xff]
    %v1402 = vld [vmem:[#allocation6 + $0x168] sm:$0xff]
    %v1403 = vld [vmem:[#allocation6 + $0x170] sm:$0xff]
    %v1404 = vld [vmem:[#allocation6 + $0x178] sm:$0xff]
    %v1405 = vpack.c.bf16 %v1400, %v1400
    %v1406 = vpack.c.bf16 %v1402, %v1401
    %v1407 = vpack.c.bf16 %v1404, %v1403
    %v1408 = vld [vmem:[#allocation6 + $0x180] sm:$0x1]
    %v1409 = vlaneseq
    %v1410 = vshrl.u32 %v1409, 7
    %v1411 = vsub.s32 0, %v1410
    %v1412 = vrot.slane %v1408, %v1411
    %v1414 = vsel %vm392, %v1405, 0
    %1416 = vmatprep.subr.bf16.mxu0 0
    %1417 = vmatpush1.bf16.msra.mxu0 %v1406
    %1418 = vmatprep.subr.bf16.mxu0 0
    %1419 = vmatpush1.bf16.msra.mxu0 %v1407
    %1420 = vmatprep.subr.bf16.mxu0 0
    %1421 = vmatpush1.bf16.msra.mxu0 0
    %1422 = vmatprep.subr.bf16.mxu0 0
    %1423 = vmatpush1.bf16.msra.mxu0 0
    %1424 = vmatprep.subr.bf16.mxu0 0
    %1425 = vmatpush1.bf16.msra.mxu0 0
    %1426 = vmatprep.subr.bf16.mxu0 0
    %1427 = vmatpush1.bf16.msra.mxu0 0
    %1428 = vmatprep.subr.bf16.mxu0 0
    %1429 = vmatpush1.bf16.msra.mxu0 0
    %1430 = vmatprep.subr.bf16.mxu0 0
    %1431 = vmatpush1.bf16.msra.mxu0 0
    %1432 = vmatprep.subr.bf16.mxu0 0
    %1433 = vmatpush1.bf16.msra.mxu0 0
    %1434 = vmatprep.subr.bf16.mxu0 0
    %1435 = vmatpush1.bf16.msra.mxu0 0
    %1436 = vmatprep.subr.bf16.mxu0 0
    %1437 = vmatpush1.bf16.msra.mxu0 0
    %1438 = vmatprep.subr.bf16.mxu0 0
    %1439 = vmatpush1.bf16.msra.mxu0 0
    %1440 = vmatprep.subr.bf16.mxu0 0
    %1441 = vmatpush1.bf16.msra.mxu0 0
    %1442 = vmatprep.subr.bf16.mxu0 0
    %1443 = vmatpush1.bf16.msra.mxu0 0
    %1444 = vmatprep.subr.bf16.mxu0 0
    %1445 = vmatpush1.bf16.msra.mxu0 0
    %1446 = vmatprep.subr.bf16.mxu0 0
    %1447 = vmatpush1.bf16.msra.mxu0 0
    %1448 = vmatprep.mubr.bf16.mxu0 0
    %1449 = vmatmul.mubr.bf16.gmra.mrb[0].mxu0 %v1414
    %v1450 = vpop.f32.mrb[0].mxu0
    %v1451 = vadd.f32 %v1412, %v1450
    %v1452 = vpop.f32.mrb[0].mxu0
    %v1453 = vpop.f32.mrb[0].mxu0
    %v1454 = vpop.f32.mrb[0].mxu0
    %1455 = vdwg.mxu0
    %v1456 = vmin.f32 %v1451, 0.0
    %v1457 = vmul.f32 %v1456, 1.442695
    %v1458 = vpow.pop %v1457
    %v1459 = vsub.f32 %v1458, 1.0
    %vm1460 = vcmp.gt.f32.partialorder %v1456, -0.001
    %v1461 = vmul.f32 %v1456, 0.5
    %v1462 = vmul.f32 %v1461, %v1456
    %v1463 = vadd.f32 %v1456, %v1462
    %v1464 = vsel %vm1460, %v1463, %v1459
    %vm1465 = vcmp.gt.f32.partialorder %v1451, 0.0
    %v1466 = vsel %vm1465, %v1451, %v1464
    %1467 = vst.msk [vmem:[#allocation2] sm:$0xff] %vm392, %v1466
    %v1468 = vld [vmem:[#allocation2] sm:$0xff]
    %v1469 = vld [vmem:[#allocation6 + $0xc0] sm:$0xff]
    %v1470 = vld [vmem:[#allocation6 + $0xc8] sm:$0xff]
    %v1471 = vld [vmem:[#allocation6 + $0xd0] sm:$0xff]
    %v1472 = vld [vmem:[#allocation6 + $0xd8] sm:$0xff]
    %v1473 = vpack.c.bf16 %v1468, %v1468
    %v1474 = vpack.c.bf16 %v1470, %v1469
    %v1475 = vpack.c.bf16 %v1472, %v1471
    %v1476 = vld [vmem:[#allocation6 + $0xe0] sm:$0x1]
    %v1477 = vlaneseq
    %v1478 = vshrl.u32 %v1477, 7
    %v1479 = vsub.s32 0, %v1478
    %v1480 = vrot.slane %v1476, %v1479
    %v1482 = vsel %vm392, %v1473, 0
    %1484 = vmatprep.subr.bf16.mxu0 0
    %1485 = vmatpush1.bf16.msra.mxu0 %v1474
    %1486 = vmatprep.subr.bf16.mxu0 0
    %1487 = vmatpush1.bf16.msra.mxu0 %v1475
    %1488 = vmatprep.subr.bf16.mxu0 0
    %1489 = vmatpush1.bf16.msra.mxu0 0
    %1490 = vmatprep.subr.bf16.mxu0 0
    %1491 = vmatpush1.bf16.msra.mxu0 0
    %1492 = vmatprep.subr.bf16.mxu0 0
    %1493 = vmatpush1.bf16.msra.mxu0 0
    %1494 = vmatprep.subr.bf16.mxu0 0
    %1495 = vmatpush1.bf16.msra.mxu0 0
    %1496 = vmatprep.subr.bf16.mxu0 0
    %1497 = vmatpush1.bf16.msra.mxu0 0
    %1498 = vmatprep.subr.bf16.mxu0 0
    %1499 = vmatpush1.bf16.msra.mxu0 0
    %1500 = vmatprep.subr.bf16.mxu0 0
    %1501 = vmatpush1.bf16.msra.mxu0 0
    %1502 = vmatprep.subr.bf16.mxu0 0
    %1503 = vmatpush1.bf16.msra.mxu0 0
    %1504 = vmatprep.subr.bf16.mxu0 0
    %1505 = vmatpush1.bf16.msra.mxu0 0
    %1506 = vmatprep.subr.bf16.mxu0 0
    %1507 = vmatpush1.bf16.msra.mxu0 0
    %1508 = vmatprep.subr.bf16.mxu0 0
    %1509 = vmatpush1.bf16.msra.mxu0 0
    %1510 = vmatprep.subr.bf16.mxu0 0
    %1511 = vmatpush1.bf16.msra.mxu0 0
    %1512 = vmatprep.subr.bf16.mxu0 0
    %1513 = vmatpush1.bf16.msra.mxu0 0
    %1514 = vmatprep.subr.bf16.mxu0 0
    %1515 = vmatpush1.bf16.msra.mxu0 0
    %1516 = vmatprep.mubr.bf16.mxu0 0
    %1517 = vmatmul.mubr.bf16.gmra.mrb[0].mxu0 %v1482
    %v1518 = vpop.f32.mrb[0].mxu0
    %v1519 = vadd.f32 %v1480, %v1518
    %v1520 = vpop.f32.mrb[0].mxu0
    %v1521 = vpop.f32.mrb[0].mxu0
    %v1522 = vpop.f32.mrb[0].mxu0
    %1523 = vdwg.mxu0
    %v1524 = vmin.f32 %v1519, 0.0
    %v1525 = vmul.f32 %v1524, 1.442695
    %v1526 = vpow.pop %v1525
    %v1527 = vsub.f32 %v1526, 1.0
    %vm1528 = vcmp.gt.f32.partialorder %v1524, -0.001
    %v1529 = vmul.f32 %v1524, 0.5
    %v1530 = vmul.f32 %v1529, %v1524
    %v1531 = vadd.f32 %v1524, %v1530
    %v1532 = vsel %vm1528, %v1531, %v1527
    %vm1533 = vcmp.gt.f32.partialorder %v1519, 0.0
    %v1534 = vsel %vm1533, %v1519, %v1532
    %v1535 = vld [vmem:[#allocation6 + $0xe8] sm:$0xff]
    %v1536 = vld [vmem:[#allocation6 + $0xf0] sm:$0xff]
    %v1537 = vld [vmem:[#allocation6 + $0xf8] sm:$0xff]
    %v1538 = vld [vmem:[#allocation6 + $0x100] sm:$0xff]
    %v1539 = vpack.c.bf16 %v1534, %v1534
    %v1540 = vpack.c.bf16 %v1536, %v1535
    %v1541 = vpack.c.bf16 %v1538, %v1537
    %v1542 = vld [vmem:[#allocation6 + $0x108] sm:$0x1]
    %v1543 = vlaneseq
    %v1544 = vshrl.u32 %v1543, 7
    %v1545 = vsub.s32 0, %v1544
    %v1546 = vrot.slane %v1542, %v1545
    %v1548 = vsel %vm392, %v1539, 0
    %1550 = vmatprep.subr.bf16.mxu0 0
    %1551 = vmatpush1.bf16.msra.mxu0 %v1540
    %1552 = vmatprep.subr.bf16.mxu0 0
    %1553 = vmatpush1.bf16.msra.mxu0 %v1541
    %1554 = vmatprep.subr.bf16.mxu0 0
    %1555 = vmatpush1.bf16.msra.mxu0 0
    %1556 = vmatprep.subr.bf16.mxu0 0
    %1557 = vmatpush1.bf16.msra.mxu0 0
    %1558 = vmatprep.subr.bf16.mxu0 0
    %1559 = vmatpush1.bf16.msra.mxu0 0
    %1560 = vmatprep.subr.bf16.mxu0 0
    %1561 = vmatpush1.bf16.msra.mxu0 0
    %1562 = vmatprep.subr.bf16.mxu0 0
    %1563 = vmatpush1.bf16.msra.mxu0 0
    %1564 = vmatprep.subr.bf16.mxu0 0
    %1565 = vmatpush1.bf16.msra.mxu0 0
    %1566 = vmatprep.subr.bf16.mxu0 0
    %1567 = vmatpush1.bf16.msra.mxu0 0
    %1568 = vmatprep.subr.bf16.mxu0 0
    %1569 = vmatpush1.bf16.msra.mxu0 0
    %1570 = vmatprep.subr.bf16.mxu0 0
    %1571 = vmatpush1.bf16.msra.mxu0 0
    %1572 = vmatprep.subr.bf16.mxu0 0
    %1573 = vmatpush1.bf16.msra.mxu0 0
    %1574 = vmatprep.subr.bf16.mxu0 0
    %1575 = vmatpush1.bf16.msra.mxu0 0
    %1576 = vmatprep.subr.bf16.mxu0 0
    %1577 = vmatpush1.bf16.msra.mxu0 0
    %1578 = vmatprep.subr.bf16.mxu0 0
    %1579 = vmatpush1.bf16.msra.mxu0 0
    %1580 = vmatprep.subr.bf16.mxu0 0
    %1581 = vmatpush1.bf16.msra.mxu0 0
    %1582 = vmatprep.mubr.bf16.mxu0 0
    %1583 = vmatmul.mubr.bf16.gmra.mrb[0].mxu0 %v1548
    %v1584 = vpop.f32.mrb[0].mxu0
    %v1585 = vadd.f32 %v1546, %v1584
    %v1586 = vpop.f32.mrb[0].mxu0
    %v1587 = vpop.f32.mrb[0].mxu0
    %v1588 = vpop.f32.mrb[0].mxu0
    %1589 = vdwg.mxu0
    %v1590 = vmin.f32 %v1585, 0.0
    %v1591 = vmul.f32 %v1590, 1.442695
    %v1592 = vpow.pop %v1591
    %v1593 = vsub.f32 %v1592, 1.0
    %vm1594 = vcmp.gt.f32.partialorder %v1590, -0.001
    %v1595 = vmul.f32 %v1590, 0.5
    %v1596 = vmul.f32 %v1595, %v1590
    %v1597 = vadd.f32 %v1590, %v1596
    %v1598 = vsel %vm1594, %v1597, %v1593
    %vm1599 = vcmp.gt.f32.partialorder %v1585, 0.0
    %v1600 = vsel %vm1599, %v1585, %v1598
    %v1601 = vld [vmem:[#allocation6 + $0x188] sm:$0xff]
    %v1602 = vld [vmem:[#allocation6 + $0x190] sm:$0xff]
    %v1603 = vld [vmem:[#allocation6 + $0x198] sm:$0xff]
    %v1604 = vld [vmem:[#allocation6 + $0x1a0] sm:$0xff]
    %v1605 = vpack.c.bf16 %v1600, %v1600
    %v1606 = vpack.c.bf16 %v1602, %v1601
    %v1607 = vpack.c.bf16 %v1604, %v1603
    %v1608 = vld [vmem:[#allocation6 + $0x1a8] sm:$0x1]
    %v1609 = vlaneseq
    %v1610 = vshrl.u32 %v1609, 7
    %v1611 = vsub.s32 0, %v1610
    %v1612 = vrot.slane %v1608, %v1611
    %v1614 = vsel %vm392, %v1605, 0
    %1616 = vmatprep.subr.bf16.mxu0 0
    %1617 = vmatpush1.bf16.msra.mxu0 %v1606
    %1618 = vmatprep.subr.bf16.mxu0 0
    %1619 = vmatpush1.bf16.msra.mxu0 %v1607
    %1620 = vmatprep.subr.bf16.mxu0 0
    %1621 = vmatpush1.bf16.msra.mxu0 0
    %1622 = vmatprep.subr.bf16.mxu0 0
    %1623 = vmatpush1.bf16.msra.mxu0 0
    %1624 = vmatprep.subr.bf16.mxu0 0
    %1625 = vmatpush1.bf16.msra.mxu0 0
    %1626 = vmatprep.subr.bf16.mxu0 0
    %1627 = vmatpush1.bf16.msra.mxu0 0
    %1628 = vmatprep.subr.bf16.mxu0 0
    %1629 = vmatpush1.bf16.msra.mxu0 0
    %1630 = vmatprep.subr.bf16.mxu0 0
    %1631 = vmatpush1.bf16.msra.mxu0 0
    %1632 = vmatprep.subr.bf16.mxu0 0
    %1633 = vmatpush1.bf16.msra.mxu0 0
    %1634 = vmatprep.subr.bf16.mxu0 0
    %1635 = vmatpush1.bf16.msra.mxu0 0
    %1636 = vmatprep.subr.bf16.mxu0 0
    %1637 = vmatpush1.bf16.msra.mxu0 0
    %1638 = vmatprep.subr.bf16.mxu0 0
    %1639 = vmatpush1.bf16.msra.mxu0 0
    %1640 = vmatprep.subr.bf16.mxu0 0
    %1641 = vmatpush1.bf16.msra.mxu0 0
    %1642 = vmatprep.subr.bf16.mxu0 0
    %1643 = vmatpush1.bf16.msra.mxu0 0
    %1644 = vmatprep.subr.bf16.mxu0 0
    %1645 = vmatpush1.bf16.msra.mxu0 0
    %1646 = vmatprep.subr.bf16.mxu0 0
    %1647 = vmatpush1.bf16.msra.mxu0 0
    %1648 = vmatprep.mubr.bf16.mxu0 0
    %1649 = vmatmul.mubr.bf16.gmra.mrb[0].mxu0 %v1614
    %v1650 = vpop.f32.mrb[0].mxu0
    %v1651 = vadd.f32 %v1612, %v1650
    %v1652 = vpop.f32.mrb[0].mxu0
    %v1653 = vpop.f32.mrb[0].mxu0
    %v1654 = vpop.f32.mrb[0].mxu0
    %1655 = vdwg.mxu0
    %1656 = vst [vmem:[#allocation9] sm:$0xff] %v1651
    // Predicated region
    $region18: #{tpu_custom_call.1} parent=1 // pred_check
      _
    $region19: #{tpu_custom_call.1} parent=1 // pred_check_branch
      %1658 = sbr.rel (0) target = $region21
    $region20: #{tpu_custom_call.1} parent=1 // pred_region
      %s1660 = ssub.s32 128, 128
      %1661 = vsyncadd [#allocation8], %s1660
      %s1663 = sshll.u32 [#allocation9], 4
      %s1664 = int_to_ptr.vmem [resolvable:$true] %s1663
      %1666 = dma.vmem_to_hbm [thread:$0]  %s1664, 128, %s3, [#allocation8]
    $region21: #{tpu_custom_call.1} parent=1 // pred_fallthru
      _
    // Predicated region
    $region22: #{tpu_custom_call.1} parent=1 // pred_check
      _
    $region23: #{tpu_custom_call.1} parent=1 // pred_check_branch
      %1668 = sbr.rel (0) target = $region25
    $region24: #{tpu_custom_call.1} parent=1 // pred_region
      %1669 = dma.done [#allocation8], 128
    $region25: #{tpu_custom_call.1} parent=1 // pred_fallthru
      _
    %1670 = vsyncpa [#allocation7], 1
    %1671 = vsyncpa [#allocation8], 1

</llo_original>
